<compile_context>
chip_gen: v7x
topology: tpu7x:2x2x1
jax: 0.10.0
libtpu: 0.0.40
codegen_flags: <defaults>
</compile_context>

<pallas_src>
import functools

import jax
import jax.numpy as jnp
from jax import lax
from jax.experimental import pallas as pl
from jax.experimental.pallas import tpu as pltpu


def _residual_block_kernel(x_ref, mask_ref, w1_ref, b1_ref, w2_ref, b2_ref,
                           w3_ref, b3_ref, w4_ref, b4_ref, o_ref, col_ref,
                           *, H, W, B):
    # x_ref   : (1, C, B*HW)  B images of one group, spatial flattened into lanes
    # mask_ref: (9, B*HW)     precomputed 0/1 boundary-validity masks per tap
    # w1/w2   : (C, 9*C) bf16 im2col conv weights (tap-major / channel-minor)
    # b1/b2   : (C, 1) f32
    # w3      : (C, Cr) f32, b3 : (1, Cr)   squeeze 1x1 conv (W3^T layout)
    # w4      : (C, Cr) f32, b4 : (C, 1)    excite 1x1 conv (W4^T layout)
    # o_ref   : (1, C, B*HW)
    # col_ref : (9*C, B*HW) bf16 VMEM scratch, reused by both convs
    C = x_ref.shape[1]
    HW = H * W
    BHW = B * HW

    x = x_ref[0]                                          # (C, B*HW) f32

    def fill_im2col(a):
        # a: (C, B*HW) f32.  Tap t=(dy+1)*3+(dx+1) -> rows [t*C,(t+1)*C) hold
        # a[p + dy*W + dx] where in-bounds (per image), else 0 ("same" pad).
        # The roll wraps across image/row boundaries are exactly the positions
        # zeroed by the masks.
        for t, (dy, dx) in enumerate(
                [(dy, dx) for dy in (-1, 0, 1) for dx in (-1, 0, 1)]):
            off = dy * W + dx
            tap = a if off == 0 else pltpu.roll(a, (-off) % BHW, axis=1)
            if (dy, dx) != (0, 0):
                tap = tap * mask_ref[pl.ds(t, 1), :]      # (1,B*HW) f32 mask
            col_ref[pl.ds(t * C, C), :] = tap.astype(col_ref.dtype)

    # ---- fe1: conv3x3 -> relu -> conv3x3 (one K=9*C bf16 MXU matmul each) ---
    fill_im2col(x)
    h1 = jnp.maximum(
        jnp.dot(w1_ref[...], col_ref[...], preferred_element_type=jnp.float32)
        + b1_ref[...], 0.0)                               # (C, B*HW) f32

    fill_im2col(h1)
    m = (jnp.dot(w2_ref[...], col_ref[...], preferred_element_type=jnp.float32)
         + b2_ref[...])                                   # (C, B*HW) f32

    # ---- channel attention, per image: GAP -> 1x1 -> sigmoid -> 1x1 -> relu -
    # TODO(synk): at HW >= ~4K compute the GAP as a matmul against a resident
    # ones column to move it from XLU to idle MXU slack (v6e/v7x).
    w3t = w3_ref[...]                                     # (C, Cr)
    b3 = b3_ref[...]                                      # (1, Cr)
    w4t = w4_ref[...]                                     # (C, Cr)
    b4 = b4_ref[...]                                      # (C, 1)
    for b in range(B):                                    # B is small & static
        seg = m[:, b * HW:(b + 1) * HW]                   # (C, HW)
        avg = jnp.mean(seg, axis=1, keepdims=True)        # (C, 1)
        z1 = jax.nn.sigmoid(
            jnp.sum(w3t * avg, axis=0, keepdims=True) + b3)          # (1, Cr)
        z2 = jnp.maximum(
            jnp.sum(w4t * z1, axis=1, keepdims=True) + b4, 0.0)      # (C, 1)
        # lane-dense (HW multiple of 128) unmasked store
        o_ref[0, :, pl.ds(b * HW, HW)] = (seg * z2).astype(o_ref.dtype)


def _full_spec(a):
    nd = a.ndim
    return pl.BlockSpec(a.shape, lambda g, nd=nd: (0,) * nd)


def residual_block(x_nchw, params, *, block_batch=2):
    """params = (w1, b1, w2, b2, w3, b3, w4, b4); x in NCHW (PyTorch layout)."""
    w1, b1, w2, b2, w3, b3, w4, b4 = params
    N, C, H, W = x_nchw.shape
    Cr = w3.shape[1]
    HW = H * W
    # TODO(synk): if HW is not a multiple of 128, pad the lane axis, zero the
    # pad lanes in the masks and divide the GAP by the true H*W.
    assert HW % 128 == 0, "H*W must be a multiple of 128 for lane-dense stores"

    # --- group B images per grid step along the lane axis -------------------
    B = max(1, min(block_batch, N))
    G = -(-N // B)                      # ceil(N / B)
    pad = G * B - N

    x2 = x_nchw.reshape(N, C, HW)
    if pad:
        x2 = jnp.concatenate([x2, jnp.zeros((pad, C, HW), x2.dtype)], axis=0)
    # (G, B, C, HW) -> (G, C, B, HW) -> (G, C, B*HW): one-time wrapper shuffle.
    xg = x2.reshape(G, B, C, HW).transpose(0, 2, 1, 3).reshape(G, C, B * HW)

    # --- im2col weight matrices (bf16 MXU operands) --------------------------
    # W_mat[co, (ky*3+kx)*C + ci] = w_hwio[ky, kx, ci, co]
    w1m = jnp.transpose(w1, (3, 0, 1, 2)).reshape(C, 9 * C).astype(jnp.bfloat16)
    w2m = jnp.transpose(w2, (3, 0, 1, 2)).reshape(C, 9 * C).astype(jnp.bfloat16)
    b1c = b1.reshape(C, 1)
    b2c = b2.reshape(C, 1)
    w3t = w3.reshape(C, Cr)                  # (C_in, C_reduced) = W3^T
    b3r = b3.reshape(1, Cr)
    w4t = jnp.transpose(w4).reshape(C, Cr)   # (Cr, C) -> (C, Cr) = W4^T
    b4c = b4.reshape(C, 1)

    # --- per-tap boundary masks, precomputed once (resident input) ----------
    lane = jnp.arange(B * HW, dtype=jnp.int32)
    loc = lane % HW                          # per-image pixel index
    col = loc % W
    row = loc // W
    rows = []
    for dy in (-1, 0, 1):
        for dx in (-1, 0, 1):
            mk = jnp.ones((B * HW,), jnp.bool_)
            if dy == -1:
                mk = mk & (row > 0)
            elif dy == 1:
                mk = mk & (row < H - 1)
            if dx == -1:
                mk = mk & (col > 0)
            elif dx == 1:
                mk = mk & (col < W - 1)
            rows.append(mk)
    mask9 = jnp.stack(rows, axis=0).astype(jnp.float32)   # (9, B*HW)

    kernel = functools.partial(_residual_block_kernel, H=H, W=W, B=B)

    out = pl.pallas_call(
        kernel,
        out_shape=jax.ShapeDtypeStruct((G, C, B * HW), x_nchw.dtype),
        grid=(G,),
        in_specs=[
            pl.BlockSpec((1, C, B * HW), lambda g: (g, 0, 0)),
            _full_spec(mask9),
            _full_spec(w1m), _full_spec(b1c),
            _full_spec(w2m), _full_spec(b2c),
            _full_spec(w3t), _full_spec(b3r),
            _full_spec(w4t), _full_spec(b4c),
        ],
        out_specs=pl.BlockSpec((1, C, B * HW), lambda g: (g, 0, 0)),
        scratch_shapes=[pltpu.VMEM((9 * C, B * HW), jnp.bfloat16)],
        compiler_params=pltpu.CompilerParams(
            dimension_semantics=("parallel",),        # steps independent
            vmem_limit_bytes=32 * 1024 * 1024),       # explicit, v7x-safe
    )(xg, mask9, w1m, b1c, w2m, b2c, w3t, b3r, w4t, b4c)

    out = (out.reshape(G, C, B, HW).transpose(0, 2, 1, 3)
              .reshape(G * B, C, H, W))[:N]
    return out


def residual_block_ref(x_nchw, params):
    """Pure-JAX reference (lax conv) for correctness checking."""
    w1, b1, w2, b2, w3, b3, w4, b4 = params
    x = jnp.transpose(x_nchw, (0, 2, 3, 1))
    dn = ('NHWC', 'HWIO', 'NHWC')
    h1 = jax.nn.relu(
        lax.conv_general_dilated(x, w1, (1, 1), 'SAME', dimension_numbers=dn)
        + b1.reshape(1, 1, 1, -1))
    m = (lax.conv_general_dilated(h1, w2, (1, 1), 'SAME', dimension_numbers=dn)
         + b2.reshape(1, 1, 1, -1))
    avg = jnp.mean(m, axis=(1, 2))                      # (N, C)
    z1 = jax.nn.sigmoid(avg @ w3 + b3)
    z2 = jax.nn.relu(z1 @ w4 + b4)
    out = m * z2[:, None, None, :]
    return jnp.transpose(out, (0, 3, 1, 2))


def make_params(key, base_ch):
    reduction_ch = base_ch // 2
    ks = jax.random.split(key, 8)
    w1 = 0.1 * jax.random.normal(ks[0], (3, 3, base_ch, base_ch), jnp.float32)
    b1 = 0.05 * jax.random.normal(ks[1], (base_ch,), jnp.float32)
    w2 = 0.1 * jax.random.normal(ks[2], (3, 3, base_ch, base_ch), jnp.float32)
    b2 = 0.05 * jax.random.normal(ks[3], (base_ch,), jnp.float32)
    w3 = 0.1 * jax.random.normal(ks[4], (base_ch, reduction_ch), jnp.float32)
    b3 = 0.05 * jax.random.normal(ks[5], (reduction_ch,), jnp.float32)
    w4 = 0.1 * jax.random.normal(ks[6], (reduction_ch, base_ch), jnp.float32)
    b4 = 0.05 * jax.random.normal(ks[7], (base_ch,), jnp.float32)
    return (w1, b1, w2, b2, w3, b3, w4, b4)


if __name__ == "__main__":
    key = jax.random.PRNGKey(0)
    k_x, k_p = jax.random.split(key)

    # Small shapes; block_batch=2 -> grid=(2,) so both v7x TCs get a step.
    N, base_ch, H, W = 4, 16, 16, 16
    x = jax.random.normal(k_x, (N, base_ch, H, W), jnp.float32)   # NCHW
    params = make_params(k_p, base_ch)

    out = residual_block(x, params, block_batch=2)
    out = jax.block_until_ready(out)

    ref = residual_block_ref(x, params)
    assert out.shape == (N, base_ch, H, W)
    # bf16 MXU operands with f32 accumulation -> loosened tolerance.
    max_err = float(jnp.max(jnp.abs(out - ref)))
    assert jnp.allclose(out, ref, rtol=2e-2, atol=2e-2), (
        f"mismatch vs reference (max |err| = {max_err})")

    print("KERNEL_OK")
</pallas_src>

<mosaic_0001>
module attributes {stable_mosaic.version = 11 : i64} {
  func.func @_residual_block_kernel(%arg0: i32, %arg1: memref<1x16x512xf32, #tpu.memory_space<vmem>>, %arg2: memref<9x512xf32, #tpu.memory_space<vmem>>, %arg3: memref<16x144xbf16, #tpu.memory_space<vmem>>, %arg4: memref<16x1xf32, #tpu.memory_space<vmem>>, %arg5: memref<16x144xbf16, #tpu.memory_space<vmem>>, %arg6: memref<16x1xf32, #tpu.memory_space<vmem>>, %arg7: memref<16x8xf32, #tpu.memory_space<vmem>>, %arg8: memref<1x8xf32, #tpu.memory_space<vmem>>, %arg9: memref<16x8xf32, #tpu.memory_space<vmem>>, %arg10: memref<16x1xf32, #tpu.memory_space<vmem>>, %arg11: memref<1x16x512xf32, #tpu.memory_space<vmem>>, %arg12: memref<144x512xbf16, #tpu.memory_space<vmem>>) attributes {dimension_semantics = [#tpu.dimension_semantics<parallel>], iteration_bounds = array<i64: 2>, scalar_prefetch = 0 : i64, scratch_operands = 1 : i64, tpu.core_type = #tpu.core_type<tc>, window_params = [{transform_indices = @transform_0, window_bounds = array<i64: 1, 16, 512>}, {pipeline_mode = #tpu.pipeline_mode<synchronous>, transform_indices = @transform_1, window_bounds = array<i64: 9, 512>}, {pipeline_mode = #tpu.pipeline_mode<synchronous>, transform_indices = @transform_2, window_bounds = array<i64: 16, 144>}, {pipeline_mode = #tpu.pipeline_mode<synchronous>, transform_indices = @transform_3, window_bounds = array<i64: 16, 1>}, {pipeline_mode = #tpu.pipeline_mode<synchronous>, transform_indices = @transform_4, window_bounds = array<i64: 16, 144>}, {pipeline_mode = #tpu.pipeline_mode<synchronous>, transform_indices = @transform_5, window_bounds = array<i64: 16, 1>}, {pipeline_mode = #tpu.pipeline_mode<synchronous>, transform_indices = @transform_6, window_bounds = array<i64: 16, 8>}, {pipeline_mode = #tpu.pipeline_mode<synchronous>, transform_indices = @transform_7, window_bounds = array<i64: 1, 8>}, {pipeline_mode = #tpu.pipeline_mode<synchronous>, transform_indices = @transform_8, window_bounds = array<i64: 16, 8>}, {pipeline_mode = #tpu.pipeline_mode<synchronous>, transform_indices = @transform_9, window_bounds = array<i64: 16, 1>}, {transform_indices = @transform_10, window_bounds = array<i64: 1, 16, 512>}]} {
    %c0 = arith.constant 0 : index
    %c0_0 = arith.constant 0 : index
    %c0_1 = arith.constant 0 : index
    %0 = vector.load %arg1[%c0, %c0_0, %c0_1] : memref<1x16x512xf32, #tpu.memory_space<vmem>>, vector<1x16x512xf32>
    %1 = vector.shape_cast %0 : vector<1x16x512xf32> to vector<16x512xf32>
    %c17_i32 = arith.constant 17 : i32
    %2 = tpu.dynamic_rotate %1 by %c17_i32 dim 1 : vector<16x512xf32>, i32 -> vector<16x512xf32>
    %c0_2 = arith.constant 0 : index
    %c0_3 = arith.constant 0 : index
    %3 = vector.load %arg2[%c0_2, %c0_3] : memref<9x512xf32, #tpu.memory_space<vmem>>, vector<1x512xf32>
    %4 = vector.broadcast %3 : vector<1x512xf32> to vector<16x512xf32>
    %5 = arith.mulf %2, %4 : vector<16x512xf32>
    %6 = arith.truncf %5 : vector<16x512xf32> to vector<16x512xbf16>
    %c0_4 = arith.constant 0 : index
    %c0_5 = arith.constant 0 : index
    %7 = vector.load %arg12[%c0_4, %c0_5] : memref<144x512xbf16, #tpu.memory_space<vmem>>, vector<16x512xbf16>
    tpu.vector_store %arg12[%c0_4, %c0_5], %6 {strides = array<i32>} : memref<144x512xbf16, #tpu.memory_space<vmem>>, vector<16x512xbf16>,
    %c16_i32 = arith.constant 16 : i32
    %8 = tpu.dynamic_rotate %1 by %c16_i32 dim 1 : vector<16x512xf32>, i32 -> vector<16x512xf32>
    %c1 = arith.constant 1 : index
    %c0_6 = arith.constant 0 : index
    %9 = vector.load %arg2[%c1, %c0_6] : memref<9x512xf32, #tpu.memory_space<vmem>>, vector<1x512xf32>
    %10 = vector.broadcast %9 : vector<1x512xf32> to vector<16x512xf32>
    %11 = arith.mulf %8, %10 : vector<16x512xf32>
    %12 = arith.truncf %11 : vector<16x512xf32> to vector<16x512xbf16>
    %c16 = arith.constant 16 : index
    %c0_7 = arith.constant 0 : index
    %13 = vector.load %arg12[%c16, %c0_7] : memref<144x512xbf16, #tpu.memory_space<vmem>>, vector<16x512xbf16>
    tpu.vector_store %arg12[%c16, %c0_7], %12 {strides = array<i32>} : memref<144x512xbf16, #tpu.memory_space<vmem>>, vector<16x512xbf16>,
    %c15_i32 = arith.constant 15 : i32
    %14 = tpu.dynamic_rotate %1 by %c15_i32 dim 1 : vector<16x512xf32>, i32 -> vector<16x512xf32>
    %c2 = arith.constant 2 : index
    %c0_8 = arith.constant 0 : index
    %15 = vector.load %arg2[%c2, %c0_8] : memref<9x512xf32, #tpu.memory_space<vmem>>, vector<1x512xf32>
    %16 = vector.broadcast %15 : vector<1x512xf32> to vector<16x512xf32>
    %17 = arith.mulf %14, %16 : vector<16x512xf32>
    %18 = arith.truncf %17 : vector<16x512xf32> to vector<16x512xbf16>
    %c32 = arith.constant 32 : index
    %c0_9 = arith.constant 0 : index
    %19 = vector.load %arg12[%c32, %c0_9] : memref<144x512xbf16, #tpu.memory_space<vmem>>, vector<16x512xbf16>
    tpu.vector_store %arg12[%c32, %c0_9], %18 {strides = array<i32>} : memref<144x512xbf16, #tpu.memory_space<vmem>>, vector<16x512xbf16>,
    %c1_i32 = arith.constant 1 : i32
    %20 = tpu.dynamic_rotate %1 by %c1_i32 dim 1 : vector<16x512xf32>, i32 -> vector<16x512xf32>
    %c3 = arith.constant 3 : index
    %c0_10 = arith.constant 0 : index
    %21 = vector.load %arg2[%c3, %c0_10] : memref<9x512xf32, #tpu.memory_space<vmem>>, vector<1x512xf32>
    %22 = vector.broadcast %21 : vector<1x512xf32> to vector<16x512xf32>
    %23 = arith.mulf %20, %22 : vector<16x512xf32>
    %24 = arith.truncf %23 : vector<16x512xf32> to vector<16x512xbf16>
    %c48 = arith.constant 48 : index
    %c0_11 = arith.constant 0 : index
    %25 = vector.load %arg12[%c48, %c0_11] : memref<144x512xbf16, #tpu.memory_space<vmem>>, vector<16x512xbf16>
    tpu.vector_store %arg12[%c48, %c0_11], %24 {strides = array<i32>} : memref<144x512xbf16, #tpu.memory_space<vmem>>, vector<16x512xbf16>,
    %26 = arith.truncf %1 : vector<16x512xf32> to vector<16x512xbf16>
    %c64 = arith.constant 64 : index
    %c0_12 = arith.constant 0 : index
    %27 = vector.load %arg12[%c64, %c0_12] : memref<144x512xbf16, #tpu.memory_space<vmem>>, vector<16x512xbf16>
    tpu.vector_store %arg12[%c64, %c0_12], %26 {strides = array<i32>} : memref<144x512xbf16, #tpu.memory_space<vmem>>, vector<16x512xbf16>,
    %c511_i32 = arith.constant 511 : i32
    %28 = tpu.dynamic_rotate %1 by %c511_i32 dim 1 : vector<16x512xf32>, i32 -> vector<16x512xf32>
    %c5 = arith.constant 5 : index
    %c0_13 = arith.constant 0 : index
    %29 = vector.load %arg2[%c5, %c0_13] : memref<9x512xf32, #tpu.memory_space<vmem>>, vector<1x512xf32>
    %30 = vector.broadcast %29 : vector<1x512xf32> to vector<16x512xf32>
    %31 = arith.mulf %28, %30 : vector<16x512xf32>
    %32 = arith.truncf %31 : vector<16x512xf32> to vector<16x512xbf16>
    %c80 = arith.constant 80 : index
    %c0_14 = arith.constant 0 : index
    %33 = vector.load %arg12[%c80, %c0_14] : memref<144x512xbf16, #tpu.memory_space<vmem>>, vector<16x512xbf16>
    tpu.vector_store %arg12[%c80, %c0_14], %32 {strides = array<i32>} : memref<144x512xbf16, #tpu.memory_space<vmem>>, vector<16x512xbf16>,
    %c497_i32 = arith.constant 497 : i32
    %34 = tpu.dynamic_rotate %1 by %c497_i32 dim 1 : vector<16x512xf32>, i32 -> vector<16x512xf32>
    %c6 = arith.constant 6 : index
    %c0_15 = arith.constant 0 : index
    %35 = vector.load %arg2[%c6, %c0_15] : memref<9x512xf32, #tpu.memory_space<vmem>>, vector<1x512xf32>
    %36 = vector.broadcast %35 : vector<1x512xf32> to vector<16x512xf32>
    %37 = arith.mulf %34, %36 : vector<16x512xf32>
    %38 = arith.truncf %37 : vector<16x512xf32> to vector<16x512xbf16>
    %c96 = arith.constant 96 : index
    %c0_16 = arith.constant 0 : index
    %39 = vector.load %arg12[%c96, %c0_16] : memref<144x512xbf16, #tpu.memory_space<vmem>>, vector<16x512xbf16>
    tpu.vector_store %arg12[%c96, %c0_16], %38 {strides = array<i32>} : memref<144x512xbf16, #tpu.memory_space<vmem>>, vector<16x512xbf16>,
    %c496_i32 = arith.constant 496 : i32
    %40 = tpu.dynamic_rotate %1 by %c496_i32 dim 1 : vector<16x512xf32>, i32 -> vector<16x512xf32>
    %c7 = arith.constant 7 : index
    %c0_17 = arith.constant 0 : index
    %41 = vector.load %arg2[%c7, %c0_17] : memref<9x512xf32, #tpu.memory_space<vmem>>, vector<1x512xf32>
    %42 = vector.broadcast %41 : vector<1x512xf32> to vector<16x512xf32>
    %43 = arith.mulf %40, %42 : vector<16x512xf32>
    %44 = arith.truncf %43 : vector<16x512xf32> to vector<16x512xbf16>
    %c112 = arith.constant 112 : index
    %c0_18 = arith.constant 0 : index
    %45 = vector.load %arg12[%c112, %c0_18] : memref<144x512xbf16, #tpu.memory_space<vmem>>, vector<16x512xbf16>
    tpu.vector_store %arg12[%c112, %c0_18], %44 {strides = array<i32>} : memref<144x512xbf16, #tpu.memory_space<vmem>>, vector<16x512xbf16>,
    %c495_i32 = arith.constant 495 : i32
    %46 = tpu.dynamic_rotate %1 by %c495_i32 dim 1 : vector<16x512xf32>, i32 -> vector<16x512xf32>
    %c8 = arith.constant 8 : index
    %c0_19 = arith.constant 0 : index
    %47 = vector.load %arg2[%c8, %c0_19] : memref<9x512xf32, #tpu.memory_space<vmem>>, vector<1x512xf32>
    %48 = vector.broadcast %47 : vector<1x512xf32> to vector<16x512xf32>
    %49 = arith.mulf %46, %48 : vector<16x512xf32>
    %50 = arith.truncf %49 : vector<16x512xf32> to vector<16x512xbf16>
    %c128 = arith.constant 128 : index
    %c0_20 = arith.constant 0 : index
    %51 = vector.load %arg12[%c128, %c0_20] : memref<144x512xbf16, #tpu.memory_space<vmem>>, vector<16x512xbf16>
    tpu.vector_store %arg12[%c128, %c0_20], %50 {strides = array<i32>} : memref<144x512xbf16, #tpu.memory_space<vmem>>, vector<16x512xbf16>,
    %c0_21 = arith.constant 0 : index
    %c0_22 = arith.constant 0 : index
    %52 = vector.load %arg3[%c0_21, %c0_22] : memref<16x144xbf16, #tpu.memory_space<vmem>>, vector<16x144xbf16>
    %c0_23 = arith.constant 0 : index
    %c0_24 = arith.constant 0 : index
    %53 = vector.load %arg12[%c0_23, %c0_24] : memref<144x512xbf16, #tpu.memory_space<vmem>>, vector<144x512xbf16>
    %cst = arith.constant dense<0.000000e+00> : vector<16x512xf32>
    %54 = tpu.matmul %52, %53, %cst {dimension_numbers = #tpu.dot_dimension_numbers<[1], [0], [0], [1], [0, 0, 1, 1], [], []>} : vector<16x144xbf16>, vector<144x512xbf16>, vector<16x512xf32> -> vector<16x512xf32>
    %c0_25 = arith.constant 0 : index
    %c0_26 = arith.constant 0 : index
    %55 = vector.load %arg4[%c0_25, %c0_26] : memref<16x1xf32, #tpu.memory_space<vmem>>, vector<16x1xf32>
    %56 = vector.broadcast %55 : vector<16x1xf32> to vector<16x512xf32>
    %57 = arith.addf %54, %56 : vector<16x512xf32>
    %cst_27 = arith.constant 0.000000e+00 : f32
    %58 = vector.broadcast %cst_27 : f32 to vector<16x512xf32>
    %59 = arith.maximumf %57, %58 : vector<16x512xf32>
    %c17_i32_28 = arith.constant 17 : i32
    %60 = tpu.dynamic_rotate %59 by %c17_i32_28 dim 1 : vector<16x512xf32>, i32 -> vector<16x512xf32>
    %c0_29 = arith.constant 0 : index
    %c0_30 = arith.constant 0 : index
    %61 = vector.load %arg2[%c0_29, %c0_30] : memref<9x512xf32, #tpu.memory_space<vmem>>, vector<1x512xf32>
    %62 = vector.broadcast %61 : vector<1x512xf32> to vector<16x512xf32>
    %63 = arith.mulf %60, %62 : vector<16x512xf32>
    %64 = arith.truncf %63 : vector<16x512xf32> to vector<16x512xbf16>
    %c0_31 = arith.constant 0 : index
    %c0_32 = arith.constant 0 : index
    %65 = vector.load %arg12[%c0_31, %c0_32] : memref<144x512xbf16, #tpu.memory_space<vmem>>, vector<16x512xbf16>
    tpu.vector_store %arg12[%c0_31, %c0_32], %64 {strides = array<i32>} : memref<144x512xbf16, #tpu.memory_space<vmem>>, vector<16x512xbf16>,
    %c16_i32_33 = arith.constant 16 : i32
    %66 = tpu.dynamic_rotate %59 by %c16_i32_33 dim 1 : vector<16x512xf32>, i32 -> vector<16x512xf32>
    %c1_34 = arith.constant 1 : index
    %c0_35 = arith.constant 0 : index
    %67 = vector.load %arg2[%c1_34, %c0_35] : memref<9x512xf32, #tpu.memory_space<vmem>>, vector<1x512xf32>
    %68 = vector.broadcast %67 : vector<1x512xf32> to vector<16x512xf32>
    %69 = arith.mulf %66, %68 : vector<16x512xf32>
    %70 = arith.truncf %69 : vector<16x512xf32> to vector<16x512xbf16>
    %c16_36 = arith.constant 16 : index
    %c0_37 = arith.constant 0 : index
    %71 = vector.load %arg12[%c16_36, %c0_37] : memref<144x512xbf16, #tpu.memory_space<vmem>>, vector<16x512xbf16>
    tpu.vector_store %arg12[%c16_36, %c0_37], %70 {strides = array<i32>} : memref<144x512xbf16, #tpu.memory_space<vmem>>, vector<16x512xbf16>,
    %c15_i32_38 = arith.constant 15 : i32
    %72 = tpu.dynamic_rotate %59 by %c15_i32_38 dim 1 : vector<16x512xf32>, i32 -> vector<16x512xf32>
    %c2_39 = arith.constant 2 : index
    %c0_40 = arith.constant 0 : index
    %73 = vector.load %arg2[%c2_39, %c0_40] : memref<9x512xf32, #tpu.memory_space<vmem>>, vector<1x512xf32>
    %74 = vector.broadcast %73 : vector<1x512xf32> to vector<16x512xf32>
    %75 = arith.mulf %72, %74 : vector<16x512xf32>
    %76 = arith.truncf %75 : vector<16x512xf32> to vector<16x512xbf16>
    %c32_41 = arith.constant 32 : index
    %c0_42 = arith.constant 0 : index
    %77 = vector.load %arg12[%c32_41, %c0_42] : memref<144x512xbf16, #tpu.memory_space<vmem>>, vector<16x512xbf16>
    tpu.vector_store %arg12[%c32_41, %c0_42], %76 {strides = array<i32>} : memref<144x512xbf16, #tpu.memory_space<vmem>>, vector<16x512xbf16>,
    %c1_i32_43 = arith.constant 1 : i32
    %78 = tpu.dynamic_rotate %59 by %c1_i32_43 dim 1 : vector<16x512xf32>, i32 -> vector<16x512xf32>
    %c3_44 = arith.constant 3 : index
    %c0_45 = arith.constant 0 : index
    %79 = vector.load %arg2[%c3_44, %c0_45] : memref<9x512xf32, #tpu.memory_space<vmem>>, vector<1x512xf32>
    %80 = vector.broadcast %79 : vector<1x512xf32> to vector<16x512xf32>
    %81 = arith.mulf %78, %80 : vector<16x512xf32>
    %82 = arith.truncf %81 : vector<16x512xf32> to vector<16x512xbf16>
    %c48_46 = arith.constant 48 : index
    %c0_47 = arith.constant 0 : index
    %83 = vector.load %arg12[%c48_46, %c0_47] : memref<144x512xbf16, #tpu.memory_space<vmem>>, vector<16x512xbf16>
    tpu.vector_store %arg12[%c48_46, %c0_47], %82 {strides = array<i32>} : memref<144x512xbf16, #tpu.memory_space<vmem>>, vector<16x512xbf16>,
    %84 = arith.truncf %59 : vector<16x512xf32> to vector<16x512xbf16>
    %c64_48 = arith.constant 64 : index
    %c0_49 = arith.constant 0 : index
    %85 = vector.load %arg12[%c64_48, %c0_49] : memref<144x512xbf16, #tpu.memory_space<vmem>>, vector<16x512xbf16>
    tpu.vector_store %arg12[%c64_48, %c0_49], %84 {strides = array<i32>} : memref<144x512xbf16, #tpu.memory_space<vmem>>, vector<16x512xbf16>,
    %c511_i32_50 = arith.constant 511 : i32
    %86 = tpu.dynamic_rotate %59 by %c511_i32_50 dim 1 : vector<16x512xf32>, i32 -> vector<16x512xf32>
    %c5_51 = arith.constant 5 : index
    %c0_52 = arith.constant 0 : index
    %87 = vector.load %arg2[%c5_51, %c0_52] : memref<9x512xf32, #tpu.memory_space<vmem>>, vector<1x512xf32>
    %88 = vector.broadcast %87 : vector<1x512xf32> to vector<16x512xf32>
    %89 = arith.mulf %86, %88 : vector<16x512xf32>
    %90 = arith.truncf %89 : vector<16x512xf32> to vector<16x512xbf16>
    %c80_53 = arith.constant 80 : index
    %c0_54 = arith.constant 0 : index
    %91 = vector.load %arg12[%c80_53, %c0_54] : memref<144x512xbf16, #tpu.memory_space<vmem>>, vector<16x512xbf16>
    tpu.vector_store %arg12[%c80_53, %c0_54], %90 {strides = array<i32>} : memref<144x512xbf16, #tpu.memory_space<vmem>>, vector<16x512xbf16>,
    %c497_i32_55 = arith.constant 497 : i32
    %92 = tpu.dynamic_rotate %59 by %c497_i32_55 dim 1 : vector<16x512xf32>, i32 -> vector<16x512xf32>
    %c6_56 = arith.constant 6 : index
    %c0_57 = arith.constant 0 : index
    %93 = vector.load %arg2[%c6_56, %c0_57] : memref<9x512xf32, #tpu.memory_space<vmem>>, vector<1x512xf32>
    %94 = vector.broadcast %93 : vector<1x512xf32> to vector<16x512xf32>
    %95 = arith.mulf %92, %94 : vector<16x512xf32>
    %96 = arith.truncf %95 : vector<16x512xf32> to vector<16x512xbf16>
    %c96_58 = arith.constant 96 : index
    %c0_59 = arith.constant 0 : index
    %97 = vector.load %arg12[%c96_58, %c0_59] : memref<144x512xbf16, #tpu.memory_space<vmem>>, vector<16x512xbf16>
    tpu.vector_store %arg12[%c96_58, %c0_59], %96 {strides = array<i32>} : memref<144x512xbf16, #tpu.memory_space<vmem>>, vector<16x512xbf16>,
    %c496_i32_60 = arith.constant 496 : i32
    %98 = tpu.dynamic_rotate %59 by %c496_i32_60 dim 1 : vector<16x512xf32>, i32 -> vector<16x512xf32>
    %c7_61 = arith.constant 7 : index
    %c0_62 = arith.constant 0 : index
    %99 = vector.load %arg2[%c7_61, %c0_62] : memref<9x512xf32, #tpu.memory_space<vmem>>, vector<1x512xf32>
    %100 = vector.broadcast %99 : vector<1x512xf32> to vector<16x512xf32>
    %101 = arith.mulf %98, %100 : vector<16x512xf32>
    %102 = arith.truncf %101 : vector<16x512xf32> to vector<16x512xbf16>
    %c112_63 = arith.constant 112 : index
    %c0_64 = arith.constant 0 : index
    %103 = vector.load %arg12[%c112_63, %c0_64] : memref<144x512xbf16, #tpu.memory_space<vmem>>, vector<16x512xbf16>
    tpu.vector_store %arg12[%c112_63, %c0_64], %102 {strides = array<i32>} : memref<144x512xbf16, #tpu.memory_space<vmem>>, vector<16x512xbf16>,
    %c495_i32_65 = arith.constant 495 : i32
    %104 = tpu.dynamic_rotate %59 by %c495_i32_65 dim 1 : vector<16x512xf32>, i32 -> vector<16x512xf32>
    %c8_66 = arith.constant 8 : index
    %c0_67 = arith.constant 0 : index
    %105 = vector.load %arg2[%c8_66, %c0_67] : memref<9x512xf32, #tpu.memory_space<vmem>>, vector<1x512xf32>
    %106 = vector.broadcast %105 : vector<1x512xf32> to vector<16x512xf32>
    %107 = arith.mulf %104, %106 : vector<16x512xf32>
    %108 = arith.truncf %107 : vector<16x512xf32> to vector<16x512xbf16>
    %c128_68 = arith.constant 128 : index
    %c0_69 = arith.constant 0 : index
    %109 = vector.load %arg12[%c128_68, %c0_69] : memref<144x512xbf16, #tpu.memory_space<vmem>>, vector<16x512xbf16>
    tpu.vector_store %arg12[%c128_68, %c0_69], %108 {strides = array<i32>} : memref<144x512xbf16, #tpu.memory_space<vmem>>, vector<16x512xbf16>,
    %c0_70 = arith.constant 0 : index
    %c0_71 = arith.constant 0 : index
    %110 = vector.load %arg5[%c0_70, %c0_71] : memref<16x144xbf16, #tpu.memory_space<vmem>>, vector<16x144xbf16>
    %c0_72 = arith.constant 0 : index
    %c0_73 = arith.constant 0 : index
    %111 = vector.load %arg12[%c0_72, %c0_73] : memref<144x512xbf16, #tpu.memory_space<vmem>>, vector<144x512xbf16>
    %cst_74 = arith.constant dense<0.000000e+00> : vector<16x512xf32>
    %112 = tpu.matmul %110, %111, %cst_74 {dimension_numbers = #tpu.dot_dimension_numbers<[1], [0], [0], [1], [0, 0, 1, 1], [], []>} : vector<16x144xbf16>, vector<144x512xbf16>, vector<16x512xf32> -> vector<16x512xf32>
    %c0_75 = arith.constant 0 : index
    %c0_76 = arith.constant 0 : index
    %113 = vector.load %arg6[%c0_75, %c0_76] : memref<16x1xf32, #tpu.memory_space<vmem>>, vector<16x1xf32>
    %114 = vector.broadcast %113 : vector<16x1xf32> to vector<16x512xf32>
    %115 = arith.addf %112, %114 : vector<16x512xf32>
    %c0_77 = arith.constant 0 : index
    %c0_78 = arith.constant 0 : index
    %116 = vector.load %arg7[%c0_77, %c0_78] : memref<16x8xf32, #tpu.memory_space<vmem>>, vector<16x8xf32>
    %c0_79 = arith.constant 0 : index
    %c0_80 = arith.constant 0 : index
    %117 = vector.load %arg8[%c0_79, %c0_80] : memref<1x8xf32, #tpu.memory_space<vmem>>, vector<1x8xf32>
    %c0_81 = arith.constant 0 : index
    %c0_82 = arith.constant 0 : index
    %118 = vector.load %arg9[%c0_81, %c0_82] : memref<16x8xf32, #tpu.memory_space<vmem>>, vector<16x8xf32>
    %c0_83 = arith.constant 0 : index
    %c0_84 = arith.constant 0 : index
    %119 = vector.load %arg10[%c0_83, %c0_84] : memref<16x1xf32, #tpu.memory_space<vmem>>, vector<16x1xf32>
    %120 = vector.extract_strided_slice %115 {offsets = [0, 0], sizes = [16, 256], strides = [1, 1]} : vector<16x512xf32> to vector<16x256xf32>
    %cst_85 = arith.constant dense<0.000000e+00> : vector<16xf32>
    %121 = vector.multi_reduction <add>, %120, %cst_85 [1] : vector<16x256xf32> to vector<16xf32>
    %122 = vector.shape_cast %121 : vector<16xf32> to vector<16x1xf32>
    %cst_86 = arith.constant 2.560000e+02 : f32
    %123 = vector.broadcast %cst_86 : f32 to vector<16x1xf32>
    %124 = arith.divf %122, %123 : vector<16x1xf32>
    %125 = vector.broadcast %124 : vector<16x1xf32> to vector<16x8xf32>
    %126 = arith.mulf %116, %125 : vector<16x8xf32>
    %cst_87 = arith.constant dense<0.000000e+00> : vector<8xf32>
    %127 = vector.multi_reduction <add>, %126, %cst_87 [0] : vector<16x8xf32> to vector<8xf32>
    %128 = vector.shape_cast %127 : vector<8xf32> to vector<1x8xf32>
    %129 = arith.addf %128, %117 : vector<1x8xf32>
    %130 = arith.negf %129 : vector<1x8xf32>
    %131 = math.exp %130 : vector<1x8xf32>
    %cst_88 = arith.constant 1.000000e+00 : f32
    %132 = vector.broadcast %cst_88 : f32 to vector<1x8xf32>
    %133 = arith.addf %132, %131 : vector<1x8xf32>
    %134 = arith.divf %132, %133 : vector<1x8xf32>
    %135 = vector.broadcast %134 : vector<1x8xf32> to vector<16x8xf32>
    %136 = arith.mulf %118, %135 : vector<16x8xf32>
    %cst_89 = arith.constant dense<0.000000e+00> : vector<16xf32>
    %137 = vector.multi_reduction <add>, %136, %cst_89 [1] : vector<16x8xf32> to vector<16xf32>
    %138 = vector.shape_cast %137 : vector<16xf32> to vector<16x1xf32>
    %139 = arith.addf %138, %119 : vector<16x1xf32>
    %cst_90 = arith.constant 0.000000e+00 : f32
    %140 = vector.broadcast %cst_90 : f32 to vector<16x1xf32>
    %141 = arith.maximumf %139, %140 : vector<16x1xf32>
    %142 = vector.broadcast %141 : vector<16x1xf32> to vector<16x256xf32>
    %143 = arith.mulf %120, %142 : vector<16x256xf32>
    %c0_91 = arith.constant 0 : index
    %c0_92 = arith.constant 0 : index
    %c0_93 = arith.constant 0 : index
    %144 = vector.load %arg11[%c0_91, %c0_92, %c0_93] : memref<1x16x512xf32, #tpu.memory_space<vmem>>, vector<1x16x256xf32>
    %145 = vector.shape_cast %144 : vector<1x16x256xf32> to vector<16x256xf32>
    %146 = vector.shape_cast %143 : vector<16x256xf32> to vector<1x16x256xf32>
    tpu.vector_store %arg11[%c0_91, %c0_92, %c0_93], %146 {strides = array<i32>} : memref<1x16x512xf32, #tpu.memory_space<vmem>>, vector<1x16x256xf32>,
    %147 = vector.extract_strided_slice %115 {offsets = [0, 256], sizes = [16, 256], strides = [1, 1]} : vector<16x512xf32> to vector<16x256xf32>
    %cst_94 = arith.constant dense<0.000000e+00> : vector<16xf32>
    %148 = vector.multi_reduction <add>, %147, %cst_94 [1] : vector<16x256xf32> to vector<16xf32>
    %149 = vector.shape_cast %148 : vector<16xf32> to vector<16x1xf32>
    %cst_95 = arith.constant 2.560000e+02 : f32
    %150 = vector.broadcast %cst_95 : f32 to vector<16x1xf32>
    %151 = arith.divf %149, %150 : vector<16x1xf32>
    %152 = vector.broadcast %151 : vector<16x1xf32> to vector<16x8xf32>
    %153 = arith.mulf %116, %152 : vector<16x8xf32>
    %cst_96 = arith.constant dense<0.000000e+00> : vector<8xf32>
    %154 = vector.multi_reduction <add>, %153, %cst_96 [0] : vector<16x8xf32> to vector<8xf32>
    %155 = vector.shape_cast %154 : vector<8xf32> to vector<1x8xf32>
    %156 = arith.addf %155, %117 : vector<1x8xf32>
    %157 = arith.negf %156 : vector<1x8xf32>
    %158 = math.exp %157 : vector<1x8xf32>
    %cst_97 = arith.constant 1.000000e+00 : f32
    %159 = vector.broadcast %cst_97 : f32 to vector<1x8xf32>
    %160 = arith.addf %159, %158 : vector<1x8xf32>
    %161 = arith.divf %159, %160 : vector<1x8xf32>
    %162 = vector.broadcast %161 : vector<1x8xf32> to vector<16x8xf32>
    %163 = arith.mulf %118, %162 : vector<16x8xf32>
    %cst_98 = arith.constant dense<0.000000e+00> : vector<16xf32>
    %164 = vector.multi_reduction <add>, %163, %cst_98 [1] : vector<16x8xf32> to vector<16xf32>
    %165 = vector.shape_cast %164 : vector<16xf32> to vector<16x1xf32>
    %166 = arith.addf %165, %119 : vector<16x1xf32>
    %cst_99 = arith.constant 0.000000e+00 : f32
    %167 = vector.broadcast %cst_99 : f32 to vector<16x1xf32>
    %168 = arith.maximumf %166, %167 : vector<16x1xf32>
    %169 = vector.broadcast %168 : vector<16x1xf32> to vector<16x256xf32>
    %170 = arith.mulf %147, %169 : vector<16x256xf32>
    %c0_100 = arith.constant 0 : index
    %c0_101 = arith.constant 0 : index
    %c256 = arith.constant 256 : index
    %171 = vector.load %arg11[%c0_100, %c0_101, %c256] : memref<1x16x512xf32, #tpu.memory_space<vmem>>, vector<1x16x256xf32>
    %172 = vector.shape_cast %171 : vector<1x16x256xf32> to vector<16x256xf32>
    %173 = vector.shape_cast %170 : vector<16x256xf32> to vector<1x16x256xf32>
    tpu.vector_store %arg11[%c0_100, %c0_101, %c256], %173 {strides = array<i32>} : memref<1x16x512xf32, #tpu.memory_space<vmem>>, vector<1x16x256xf32>,
    return
  }
  func.func @transform_0(%arg0: i32) -> (i32, i32, i32) {
    %c0_i32 = arith.constant 0 : i32
    %c0_i32_0 = arith.constant 0 : i32
    %c0_i32_1 = arith.constant 0 : i32
    return %arg0, %c0_i32, %c0_i32_0 : i32, i32, i32
  }
  func.func @transform_1(%arg0: i32) -> (i32, i32) {
    %c0_i32 = arith.constant 0 : i32
    %c0_i32_0 = arith.constant 0 : i32
    %c0_i32_1 = arith.constant 0 : i32
    return %c0_i32, %c0_i32_0 : i32, i32
  }
  func.func @transform_2(%arg0: i32) -> (i32, i32) {
    %c0_i32 = arith.constant 0 : i32
    %c0_i32_0 = arith.constant 0 : i32
    %c0_i32_1 = arith.constant 0 : i32
    return %c0_i32, %c0_i32_0 : i32, i32
  }
  func.func @transform_3(%arg0: i32) -> (i32, i32) {
    %c0_i32 = arith.constant 0 : i32
    %c0_i32_0 = arith.constant 0 : i32
    %c0_i32_1 = arith.constant 0 : i32
    return %c0_i32, %c0_i32_0 : i32, i32
  }
  func.func @transform_4(%arg0: i32) -> (i32, i32) {
    %c0_i32 = arith.constant 0 : i32
    %c0_i32_0 = arith.constant 0 : i32
    %c0_i32_1 = arith.constant 0 : i32
    return %c0_i32, %c0_i32_0 : i32, i32
  }
  func.func @transform_5(%arg0: i32) -> (i32, i32) {
    %c0_i32 = arith.constant 0 : i32
    %c0_i32_0 = arith.constant 0 : i32
    %c0_i32_1 = arith.constant 0 : i32
    return %c0_i32, %c0_i32_0 : i32, i32
  }
  func.func @transform_6(%arg0: i32) -> (i32, i32) {
    %c0_i32 = arith.constant 0 : i32
    %c0_i32_0 = arith.constant 0 : i32
    %c0_i32_1 = arith.constant 0 : i32
    return %c0_i32, %c0_i32_0 : i32, i32
  }
  func.func @transform_7(%arg0: i32) -> (i32, i32) {
    %c0_i32 = arith.constant 0 : i32
    %c0_i32_0 = arith.constant 0 : i32
    %c0_i32_1 = arith.constant 0 : i32
    return %c0_i32, %c0_i32_0 : i32, i32
  }
  func.func @transform_8(%arg0: i32) -> (i32, i32) {
    %c0_i32 = arith.constant 0 : i32
    %c0_i32_0 = arith.constant 0 : i32
    %c0_i32_1 = arith.constant 0 : i32
    return %c0_i32, %c0_i32_0 : i32, i32
  }
  func.func @transform_9(%arg0: i32) -> (i32, i32) {
    %c0_i32 = arith.constant 0 : i32
    %c0_i32_0 = arith.constant 0 : i32
    %c0_i32_1 = arith.constant 0 : i32
    return %c0_i32, %c0_i32_0 : i32, i32
  }
  func.func @transform_10(%arg0: i32) -> (i32, i32, i32) {
    %c0_i32 = arith.constant 0 : i32
    %c0_i32_0 = arith.constant 0 : i32
    %c0_i32_1 = arith.constant 0 : i32
    return %arg0, %c0_i32, %c0_i32_0 : i32, i32, i32
  }
}

</mosaic_0001>

<llo_original>
// kernel: tpu_custom_call.1
$region0: #{tpu_custom_call.1}
  #allocation0 [shape = 'u32[]', space=smem, size = 0x4, offset = 0x4, fixed_abs, tag = 'smem constant byte address 0x4 - core index']
  #allocation1 [shape = 'u32[144,128]{1,0:T(1,128)}', space=vmem, size = 0x12000, scoped, tag = 'internal scratch']
  #allocation2 [shape = 'bf16[144,512]{1,0:T(16,128)(2,1)}', space=vmem, size = 0x24000, scoped, tag = 'scratch operand']
  %s0 = inlined_call_operand.hbm [shape: f32[2,16,512], index: 0, kind: input, shape index: {}]
  %s1 = inlined_call_operand.vmem [shape: f32[9,512], index: 1, kind: input, shape index: {}]
  %s2 = inlined_call_operand.vmem [shape: bf16[16,144], index: 2, kind: input, shape index: {}]
  %s3 = inlined_call_operand.vmem [shape: f32[16,1], index: 3, kind: input, shape index: {}]
  %s4 = inlined_call_operand.vmem [shape: bf16[16,144], index: 4, kind: input, shape index: {}]
  %s5 = inlined_call_operand.vmem [shape: f32[16,1], index: 5, kind: input, shape index: {}]
  %s6 = inlined_call_operand.vmem [shape: f32[16,8], index: 6, kind: input, shape index: {}]
  %s7 = inlined_call_operand.vmem [shape: f32[1,8], index: 7, kind: input, shape index: {}]
  %s8 = inlined_call_operand.vmem [shape: f32[16,8], index: 8, kind: input, shape index: {}]
  %s9 = inlined_call_operand.vmem [shape: f32[16,1], index: 9, kind: input, shape index: {}]
  %s10 = inlined_call_operand.hbm [shape: f32[2,16,512], index: 10, kind: output, shape index: {}]
  %s11 = sld [smem:[#allocation0]]
  $region77: #{tpu_custom_call.1} parent=0
    _
  %s13 = ssub.s32 1, %s11
  %s14 = scalar_select 0, %s13, %s11
  $region1: #{tpu_custom_call.1} parent=0
    #allocation3 [shape = 'u8[65536]{0}', space=vmem, size = 0x10000, scoped, tag = 'input window, operand 0']
    #allocation4 [shape = 's32[2]{0}', space=sflag, size = 0x8, scoped, tag = 'scoped memory for tpu_custom_call.1']
    #allocation5 [shape = 's32[2]{0}', space=sflag, size = 0x8, scoped, tag = 'scoped memory for tpu_custom_call.1']
    #allocation6 [shape = 'u8[65536]{0}', space=vmem, size = 0x10000, scoped, tag = 'output window, operand 0']
    %15 = vsyncpa [#allocation4], 0
    %s16 = scalar_lea.sflag [#allocation4], 1
    %17 = vsyncpa %s16, 0
    %18 = vsyncpa [#allocation5], 0
    %s19 = scalar_lea.sflag [#allocation5], 1
    %20 = vsyncpa %s19, 0
    loop: start=0, step=1, limit=4
    $region2: #{tpu_custom_call.1} parent=1 // loop_pre_header
      _
    $region3: #{tpu_custom_call.1} parent=1 // loop_header
      %s22 = sphi 0, %s26
      %p23 = scmp.ge.s32.totalorder %s22, 4
      %s32 = sphi 0, %s34
      %s35 = sphi 0, %s32
      %s36 = sphi 0, %s35
      %s52 = sphi 0, %s36
      %s56 = sphi 0, %s56
      %s58 = sphi 0, %s56
      %s59 = sphi 0, %s58
      %s73 = sphi 0, %s59
      %s77 = sphi 0, %s77
      %s79 = sphi 0, %s77
      %s80 = sphi 0, %s79
      %s94 = sphi 0, %s80
      %s98 = sphi 0, %s98
      %s100 = sphi 0, %s98
      %s101 = sphi 0, %s100
      %s115 = sphi 0, %s101
      %s119 = sphi 0, %s119
      %s121 = sphi 0, %s119
      %s122 = sphi 0, %s121
      %s136 = sphi 0, %s122
      %s140 = sphi 0, %s140
      %s142 = sphi 0, %s140
      %s143 = sphi 0, %s142
      %s157 = sphi 0, %s143
      %s161 = sphi 0, %s161
      %s163 = sphi 0, %s161
      %s164 = sphi 0, %s163
      %s178 = sphi 0, %s164
      %s182 = sphi 0, %s182
      %s184 = sphi 0, %s182
      %s185 = sphi 0, %s184
      %s199 = sphi 0, %s185
      %s203 = sphi 0, %s203
      %s205 = sphi 0, %s203
      %s206 = sphi 0, %s205
      %s220 = sphi 0, %s206
      %s224 = sphi 0, %s224
      %s226 = sphi 0, %s224
      %s227 = sphi 0, %s226
      %s241 = sphi 0, %s227
      %s247 = sphi 0, %s249
      %s250 = sphi 0, %s247
      %s251 = sphi 0, %s250
      %s267 = sphi 0, %s251
    $region4: #{tpu_custom_call.1} parent=1 // loop_header_branch
      %25 = sbr.rel (%p23) target = $region8
    $region5: #{tpu_custom_call.1} parent=1 // loop_body
      %s27 = ssub.s32 %s22, 1
      %s28 = ssub.s32 %s22, 2
      %s29 = sadd.s32 %s22, 1
      %s30 = ssub.s32 %s22, %s29
      %p31 = scmp.eq.s32.totalorder %s30, 0
      %s33 = sadd.s32 %s32, 1
      %s34 = scalar_select %p31, %s32, %s33
      %p37 = pneg %p31
      %p38 = scmp.eq.s32.totalorder %s22, 1
      %p39 = por %p37, %p38
      %p40 = scmp.ne.s32.totalorder %s32, %s35
      %p41 = scmp.eq.s32.totalorder %s22, 0
      %p42 = por %p40, %p41
      %p43 = scmp.ne.s32.totalorder %s32, %s35
      %p44 = scmp.eq.s32.totalorder %s27, 1
      %p45 = por %p43, %p44
      %p46 = scmp.ne.s32.totalorder %s35, %s36
      %p47 = scmp.eq.s32.totalorder %s27, 0
      %p48 = por %p46, %p47
      %p49 = scmp.ne.s32.totalorder %s35, %s36
      %p50 = scmp.eq.s32.totalorder %s28, 1
      %p51 = por %p49, %p50
      %p53 = scmp.ne.s32.totalorder %s36, %s52
      %p54 = scmp.eq.s32.totalorder %s28, 0
      %p55 = por %p53, %p54
      %s57 = sadd.s32 %s56, 1
      %p60 = scmp.eq.s32.totalorder %s22, 1
      %p61 = scmp.ne.s32.totalorder %s56, %s58
      %p62 = scmp.eq.s32.totalorder %s22, 0
      %p63 = por %p61, %p62
      %p64 = scmp.ne.s32.totalorder %s56, %s58
      %p65 = scmp.eq.s32.totalorder %s27, 1
      %p66 = por %p64, %p65
      %p67 = scmp.ne.s32.totalorder %s58, %s59
      %p68 = scmp.eq.s32.totalorder %s27, 0
      %p69 = por %p67, %p68
      %p70 = scmp.ne.s32.totalorder %s58, %s59
      %p71 = scmp.eq.s32.totalorder %s28, 1
      %p72 = por %p70, %p71
      %p74 = scmp.ne.s32.totalorder %s59, %s73
      %p75 = scmp.eq.s32.totalorder %s28, 0
      %p76 = por %p74, %p75
      %s78 = sadd.s32 %s77, 1
      %p81 = scmp.eq.s32.totalorder %s22, 1
      %p82 = scmp.ne.s32.totalorder %s77, %s79
      %p83 = scmp.eq.s32.totalorder %s22, 0
      %p84 = por %p82, %p83
      %p85 = scmp.ne.s32.totalorder %s77, %s79
      %p86 = scmp.eq.s32.totalorder %s27, 1
      %p87 = por %p85, %p86
      %p88 = scmp.ne.s32.totalorder %s79, %s80
      %p89 = scmp.eq.s32.totalorder %s27, 0
      %p90 = por %p88, %p89
      %p91 = scmp.ne.s32.totalorder %s79, %s80
      %p92 = scmp.eq.s32.totalorder %s28, 1
      %p93 = por %p91, %p92
      %p95 = scmp.ne.s32.totalorder %s80, %s94
      %p96 = scmp.eq.s32.totalorder %s28, 0
      %p97 = por %p95, %p96
      %s99 = sadd.s32 %s98, 1
      %p102 = scmp.eq.s32.totalorder %s22, 1
      %p103 = scmp.ne.s32.totalorder %s98, %s100
      %p104 = scmp.eq.s32.totalorder %s22, 0
      %p105 = por %p103, %p104
      %p106 = scmp.ne.s32.totalorder %s98, %s100
      %p107 = scmp.eq.s32.totalorder %s27, 1
      %p108 = por %p106, %p107
      %p109 = scmp.ne.s32.totalorder %s100, %s101
      %p110 = scmp.eq.s32.totalorder %s27, 0
      %p111 = por %p109, %p110
      %p112 = scmp.ne.s32.totalorder %s100, %s101
      %p113 = scmp.eq.s32.totalorder %s28, 1
      %p114 = por %p112, %p113
      %p116 = scmp.ne.s32.totalorder %s101, %s115
      %p117 = scmp.eq.s32.totalorder %s28, 0
      %p118 = por %p116, %p117
      %s120 = sadd.s32 %s119, 1
      %p123 = scmp.eq.s32.totalorder %s22, 1
      %p124 = scmp.ne.s32.totalorder %s119, %s121
      %p125 = scmp.eq.s32.totalorder %s22, 0
      %p126 = por %p124, %p125
      %p127 = scmp.ne.s32.totalorder %s119, %s121
      %p128 = scmp.eq.s32.totalorder %s27, 1
      %p129 = por %p127, %p128
      %p130 = scmp.ne.s32.totalorder %s121, %s122
      %p131 = scmp.eq.s32.totalorder %s27, 0
      %p132 = por %p130, %p131
      %p133 = scmp.ne.s32.totalorder %s121, %s122
      %p134 = scmp.eq.s32.totalorder %s28, 1
      %p135 = por %p133, %p134
      %p137 = scmp.ne.s32.totalorder %s122, %s136
      %p138 = scmp.eq.s32.totalorder %s28, 0
      %p139 = por %p137, %p138
      %s141 = sadd.s32 %s140, 1
      %p144 = scmp.eq.s32.totalorder %s22, 1
      %p145 = scmp.ne.s32.totalorder %s140, %s142
      %p146 = scmp.eq.s32.totalorder %s22, 0
      %p147 = por %p145, %p146
      %p148 = scmp.ne.s32.totalorder %s140, %s142
      %p149 = scmp.eq.s32.totalorder %s27, 1
      %p150 = por %p148, %p149
      %p151 = scmp.ne.s32.totalorder %s142, %s143
      %p152 = scmp.eq.s32.totalorder %s27, 0
      %p153 = por %p151, %p152
      %p154 = scmp.ne.s32.totalorder %s142, %s143
      %p155 = scmp.eq.s32.totalorder %s28, 1
      %p156 = por %p154, %p155
      %p158 = scmp.ne.s32.totalorder %s143, %s157
      %p159 = scmp.eq.s32.totalorder %s28, 0
      %p160 = por %p158, %p159
      %s162 = sadd.s32 %s161, 1
      %p165 = scmp.eq.s32.totalorder %s22, 1
      %p166 = scmp.ne.s32.totalorder %s161, %s163
      %p167 = scmp.eq.s32.totalorder %s22, 0
      %p168 = por %p166, %p167
      %p169 = scmp.ne.s32.totalorder %s161, %s163
      %p170 = scmp.eq.s32.totalorder %s27, 1
      %p171 = por %p169, %p170
      %p172 = scmp.ne.s32.totalorder %s163, %s164
      %p173 = scmp.eq.s32.totalorder %s27, 0
      %p174 = por %p172, %p173
      %p175 = scmp.ne.s32.totalorder %s163, %s164
      %p176 = scmp.eq.s32.totalorder %s28, 1
      %p177 = por %p175, %p176
      %p179 = scmp.ne.s32.totalorder %s164, %s178
      %p180 = scmp.eq.s32.totalorder %s28, 0
      %p181 = por %p179, %p180
      %s183 = sadd.s32 %s182, 1
      %p186 = scmp.eq.s32.totalorder %s22, 1
      %p187 = scmp.ne.s32.totalorder %s182, %s184
      %p188 = scmp.eq.s32.totalorder %s22, 0
      %p189 = por %p187, %p188
      %p190 = scmp.ne.s32.totalorder %s182, %s184
      %p191 = scmp.eq.s32.totalorder %s27, 1
      %p192 = por %p190, %p191
      %p193 = scmp.ne.s32.totalorder %s184, %s185
      %p194 = scmp.eq.s32.totalorder %s27, 0
      %p195 = por %p193, %p194
      %p196 = scmp.ne.s32.totalorder %s184, %s185
      %p197 = scmp.eq.s32.totalorder %s28, 1
      %p198 = por %p196, %p197
      %p200 = scmp.ne.s32.totalorder %s185, %s199
      %p201 = scmp.eq.s32.totalorder %s28, 0
      %p202 = por %p200, %p201
      %s204 = sadd.s32 %s203, 1
      %p207 = scmp.eq.s32.totalorder %s22, 1
      %p208 = scmp.ne.s32.totalorder %s203, %s205
      %p209 = scmp.eq.s32.totalorder %s22, 0
      %p210 = por %p208, %p209
      %p211 = scmp.ne.s32.totalorder %s203, %s205
      %p212 = scmp.eq.s32.totalorder %s27, 1
      %p213 = por %p211, %p212
      %p214 = scmp.ne.s32.totalorder %s205, %s206
      %p215 = scmp.eq.s32.totalorder %s27, 0
      %p216 = por %p214, %p215
      %p217 = scmp.ne.s32.totalorder %s205, %s206
      %p218 = scmp.eq.s32.totalorder %s28, 1
      %p219 = por %p217, %p218
      %p221 = scmp.ne.s32.totalorder %s206, %s220
      %p222 = scmp.eq.s32.totalorder %s28, 0
      %p223 = por %p221, %p222
      %s225 = sadd.s32 %s224, 1
      %p228 = scmp.eq.s32.totalorder %s22, 1
      %p229 = scmp.ne.s32.totalorder %s224, %s226
      %p230 = scmp.eq.s32.totalorder %s22, 0
      %p231 = por %p229, %p230
      %p232 = scmp.ne.s32.totalorder %s224, %s226
      %p233 = scmp.eq.s32.totalorder %s27, 1
      %p234 = por %p232, %p233
      %p235 = scmp.ne.s32.totalorder %s226, %s227
      %p236 = scmp.eq.s32.totalorder %s27, 0
      %p237 = por %p235, %p236
      %p238 = scmp.ne.s32.totalorder %s226, %s227
      %p239 = scmp.eq.s32.totalorder %s28, 1
      %p240 = por %p238, %p239
      %p242 = scmp.ne.s32.totalorder %s227, %s241
      %p243 = scmp.eq.s32.totalorder %s28, 0
      %p244 = por %p242, %p243
      %s245 = ssub.s32 %s22, %s29
      %p246 = scmp.eq.s32.totalorder %s245, 0
      %s248 = sadd.s32 %s247, 1
      %s249 = scalar_select %p246, %s247, %s248
      %p252 = pneg %p246
      %p253 = scmp.eq.s32.totalorder %s22, 1
      %p254 = por %p252, %p253
      %p255 = scmp.ne.s32.totalorder %s247, %s250
      %p256 = scmp.eq.s32.totalorder %s22, 0
      %p257 = por %p255, %p256
      %p258 = scmp.ne.s32.totalorder %s247, %s250
      %p259 = scmp.eq.s32.totalorder %s27, 1
      %p260 = por %p258, %p259
      %p261 = scmp.ne.s32.totalorder %s250, %s251
      %p262 = scmp.eq.s32.totalorder %s27, 0
      %p263 = por %p261, %p262
      %p264 = scmp.ne.s32.totalorder %s250, %s251
      %p265 = scmp.eq.s32.totalorder %s28, 1
      %p266 = por %p264, %p265
      %p268 = scmp.ne.s32.totalorder %s251, %s267
      %p269 = scmp.eq.s32.totalorder %s28, 0
      %p270 = por %p268, %p269
      %p271 = scmp.le.s32.totalorder 1, %s22
      %p272 = scmp.lt.s32.totalorder %s22, 3
      %p273 = pnand %p271, %p272
      %p274 = pneg %p273
      // Predicated region
      $region9: #{tpu_custom_call.1} parent=5 // pred_check
        _
      $region10: #{tpu_custom_call.1} parent=5 // pred_check_branch
        %276 = sbr.rel (%p273) target = $region12
      $region11: #{tpu_custom_call.1} parent=5 // pred_region
        %s277 = ssub.s32 %s22, 1
        // Predicated region
        $region13: #{tpu_custom_call.1} parent=11 // pred_check
          %p278 = pneg %p69
        $region14: #{tpu_custom_call.1} parent=11 // pred_check_branch
          %280 = sbr.rel (%p278) target = $region16
        $region15: #{tpu_custom_call.1} parent=11 // pred_region
          _
        $region16: #{tpu_custom_call.1} parent=11 // pred_fallthru
          _
        // Predicated region
        $region17: #{tpu_custom_call.1} parent=11 // pred_check
          %p281 = pneg %p90
        $region18: #{tpu_custom_call.1} parent=11 // pred_check_branch
          %283 = sbr.rel (%p281) target = $region20
        $region19: #{tpu_custom_call.1} parent=11 // pred_region
          _
        $region20: #{tpu_custom_call.1} parent=11 // pred_fallthru
          _
        // Predicated region
        $region21: #{tpu_custom_call.1} parent=11 // pred_check
          %p284 = pneg %p111
        $region22: #{tpu_custom_call.1} parent=11 // pred_check_branch
          %286 = sbr.rel (%p284) target = $region24
        $region23: #{tpu_custom_call.1} parent=11 // pred_region
          _
        $region24: #{tpu_custom_call.1} parent=11 // pred_fallthru
          _
        // Predicated region
        $region25: #{tpu_custom_call.1} parent=11 // pred_check
          %p287 = pneg %p132
        $region26: #{tpu_custom_call.1} parent=11 // pred_check_branch
          %289 = sbr.rel (%p287) target = $region28
        $region27: #{tpu_custom_call.1} parent=11 // pred_region
          _
        $region28: #{tpu_custom_call.1} parent=11 // pred_fallthru
          _
        // Predicated region
        $region29: #{tpu_custom_call.1} parent=11 // pred_check
          %p290 = pneg %p153
        $region30: #{tpu_custom_call.1} parent=11 // pred_check_branch
          %292 = sbr.rel (%p290) target = $region32
        $region31: #{tpu_custom_call.1} parent=11 // pred_region
          _
        $region32: #{tpu_custom_call.1} parent=11 // pred_fallthru
          _
        // Predicated region
        $region33: #{tpu_custom_call.1} parent=11 // pred_check
          %p293 = pneg %p174
        $region34: #{tpu_custom_call.1} parent=11 // pred_check_branch
          %295 = sbr.rel (%p293) target = $region36
        $region35: #{tpu_custom_call.1} parent=11 // pred_region
          _
        $region36: #{tpu_custom_call.1} parent=11 // pred_fallthru
          _
        // Predicated region
        $region37: #{tpu_custom_call.1} parent=11 // pred_check
          %p296 = pneg %p195
        $region38: #{tpu_custom_call.1} parent=11 // pred_check_branch
          %298 = sbr.rel (%p296) target = $region40
        $region39: #{tpu_custom_call.1} parent=11 // pred_region
          _
        $region40: #{tpu_custom_call.1} parent=11 // pred_fallthru
          _
        // Predicated region
        $region41: #{tpu_custom_call.1} parent=11 // pred_check
          %p299 = pneg %p216
        $region42: #{tpu_custom_call.1} parent=11 // pred_check_branch
          %301 = sbr.rel (%p299) target = $region44
        $region43: #{tpu_custom_call.1} parent=11 // pred_region
          _
        $region44: #{tpu_custom_call.1} parent=11 // pred_fallthru
          _
        // Predicated region
        $region45: #{tpu_custom_call.1} parent=11 // pred_check
          %p302 = pneg %p237
        $region46: #{tpu_custom_call.1} parent=11 // pred_check_branch
          %304 = sbr.rel (%p302) target = $region48
        $region47: #{tpu_custom_call.1} parent=11 // pred_region
          _
        $region48: #{tpu_custom_call.1} parent=11 // pred_fallthru
          _
      $region12: #{tpu_custom_call.1} parent=5 // pred_fallthru
        _
      %p305 = scmp.lt.s32.totalorder %s22, 2
      // Predicated region
      $region49: #{tpu_custom_call.1} parent=5 // pred_check
        %p306 = pneg %p305
      $region50: #{tpu_custom_call.1} parent=5 // pred_check_branch
        %308 = sbr.rel (%p306) target = $region52
      $region51: #{tpu_custom_call.1} parent=5 // pred_region
        // Predicated region
        $region53: #{tpu_custom_call.1} parent=51 // pred_check
          %p309 = pneg %p42
        $region54: #{tpu_custom_call.1} parent=51 // pred_check_branch
          %311 = sbr.rel (%p309) target = $region56
        $region55: #{tpu_custom_call.1} parent=51 // pred_region
          %s312 = sand.u32 %s32, 1
          %s313 = scalar_lea.sflag [#allocation4], %s312
          %s314 = sand.u32 %s32, 1
          %s315 = smul.addr %s314, 64
          %s316 = scalar_lea.vmem [#allocation3], %s315
          %s318 = ssub.s32 1024, 1024
          %319 = vsyncadd %s313, %s318
          %s320 = smul.addr %s22, 8
          %s321 = smul.addr %s320, 128
          %s322 = scalar_lea.hbm %s0, %s321
          %s323 = sshll.u32 %s316, 4
          %s324 = int_to_ptr.vmem [resolvable:$true] %s323
          %329 = dma.hbm_to_vmem [thread:$0]  %s322, 1024, %s324, %s313, 512, 512, 32
        $region56: #{tpu_custom_call.1} parent=51 // pred_fallthru
          _
      $region52: #{tpu_custom_call.1} parent=5 // pred_fallthru
        _
      %p330 = scmp.le.s32.totalorder 1, %s22
      %p331 = scmp.lt.s32.totalorder %s22, 3
      %p332 = pnand %p330, %p331
      %p333 = pneg %p332
      // Predicated region
      $region57: #{tpu_custom_call.1} parent=5 // pred_check
        _
      $region58: #{tpu_custom_call.1} parent=5 // pred_check_branch
        %335 = sbr.rel (%p332) target = $region60
      $region59: #{tpu_custom_call.1} parent=5 // pred_region
        %s336 = ssub.s32 %s22, 1
        %s337 = sand.u32 %s35, 1
        %s338 = scalar_lea.sflag [#allocation4], %s337
        %s339 = sand.u32 %s35, 1
        %s340 = smul.addr %s339, 64
        %s341 = scalar_lea.vmem [#allocation3], %s340
        // Predicated region
        $region61: #{tpu_custom_call.1} parent=59 // pred_check
          %p342 = pneg %p48
        $region62: #{tpu_custom_call.1} parent=59 // pred_check_branch
          %344 = sbr.rel (%p342) target = $region64
        $region63: #{tpu_custom_call.1} parent=59 // pred_region
          %345 = dma.done %s338, 1024
        $region64: #{tpu_custom_call.1} parent=59 // pred_fallthru
          _
        %s346 = sand.u32 %s35, 1
        %s347 = scalar_lea.sflag [#allocation4], %s346
        %s348 = sand.u32 %s35, 1
        %s349 = smul.addr %s348, 64
        %s350 = scalar_lea.vmem [#allocation3], %s349
        %p351 = pneg %p48
        %p352 = pneg %p45
        %p353 = pneg %p69
        %p354 = pneg %p66
        %p355 = pneg %p90
        %p356 = pneg %p87
        %p357 = pneg %p111
        %p358 = pneg %p108
        %p359 = pneg %p132
        %p360 = pneg %p129
        %p361 = pneg %p153
        %p362 = pneg %p150
        %p363 = pneg %p174
        %p364 = pneg %p171
        %p365 = pneg %p195
        %p366 = pneg %p192
        %p367 = pneg %p216
        %p368 = pneg %p213
        %p369 = pneg %p237
        %p370 = pneg %p234
        %p371 = pneg %p263
        %p372 = pneg %p260
        %s373 = sand.u32 %s250, 1
        %s374 = scalar_lea.sflag [#allocation5], %s373
        %s375 = sand.u32 %s250, 1
        %s376 = smul.addr %s375, 64
        %s377 = scalar_lea.vmem [#allocation6], %s376
        %v379 = vld [vmem:[%s341] sm:$0xff]
        %v380 = vld [vmem:[%s341 + $0x8] sm:$0xff]
        %v381 = vld [vmem:[%s341 + $0x10] sm:$0xff]
        %v382 = vld [vmem:[%s341 + $0x18] sm:$0xff]
        %v383 = vld [vmem:[%s341 + $0x20] sm:$0xff]
        %v384 = vld [vmem:[%s341 + $0x28] sm:$0xff]
        %v385 = vld [vmem:[%s341 + $0x30] sm:$0xff]
        %v386 = vld [vmem:[%s341 + $0x38] sm:$0xff]
        %387 = vrot.lane.b32.xlu0 %v379, 17
        %v388 = vpop.permute.xlu0 %387
        %389 = vrot.lane.b32.xlu0 %v383, 17
        %v390 = vpop.permute.xlu0 %389
        %391 = vrot.lane.b32.xlu0 %v380, 17
        %v392 = vpop.permute.xlu0 %391
        %393 = vrot.lane.b32.xlu0 %v384, 17
        %v394 = vpop.permute.xlu0 %393
        %395 = vrot.lane.b32.xlu0 %v381, 17
        %v396 = vpop.permute.xlu0 %395
        %397 = vrot.lane.b32.xlu0 %v385, 17
        %v398 = vpop.permute.xlu0 %397
        %399 = vrot.lane.b32.xlu0 %v382, 17
        %v400 = vpop.permute.xlu0 %399
        %401 = vrot.lane.b32.xlu0 %v386, 17
        %v402 = vpop.permute.xlu0 %401
        %v403 = vlaneseq
        %v404 = vand.u32 %v403, 127
        %vm405 = vcmp.lt.s32.totalorder %v404, 17
        %v406 = vsel %vm405, %v396, %v400
        %v407 = vsel %vm405, %v398, %v402
        %v408 = vsel %vm405, %v392, %v396
        %v409 = vsel %vm405, %v394, %v398
        %v410 = vsel %vm405, %v388, %v392
        %v411 = vsel %vm405, %v390, %v394
        %v412 = vsel %vm405, %v400, %v388
        %v413 = vsel %vm405, %v402, %v390
        %v414 = vld [vmem:[%s1] ss:$8 sm:$0xf]
        %v416 = vlaneseq
        %v417 = vshrl.u32 %v416, 7
        %v418 = vsub.s32 0, %v417
        %v419 = vrot.slane %v414, %v418
        %v420 = vlaneseq
        %v421 = vshrl.u32 %v420, 7
        %v422 = vsub.s32 1, %v421
        %v423 = vrot.slane %v414, %v422
        %v424 = vlaneseq
        %v425 = vshrl.u32 %v424, 7
        %v426 = vsub.s32 2, %v425
        %v427 = vrot.slane %v414, %v426
        %v428 = vlaneseq
        %v429 = vshrl.u32 %v428, 7
        %v430 = vsub.s32 3, %v429
        %v431 = vrot.slane %v414, %v430
        %v436 = vmul.f32 %v412, %v419
        %v437 = vmul.f32 %v410, %v423
        %v438 = vmul.f32 %v408, %v427
        %v439 = vmul.f32 %v406, %v431
        %v440 = vmul.f32 %v413, %v419
        %v441 = vmul.f32 %v411, %v423
        %v442 = vmul.f32 %v409, %v427
        %v443 = vmul.f32 %v407, %v431
        %v444 = vpack.c.bf16 %v440, %v436
        %v445 = vpack.c.bf16 %v441, %v437
        %v446 = vpack.c.bf16 %v442, %v438
        %v447 = vpack.c.bf16 %v443, %v439
        %448 = vst [vmem:[#allocation2] sm:$0xff] %v444
        %449 = vst [vmem:[#allocation2 + $0x8] sm:$0xff] %v445
        %450 = vst [vmem:[#allocation2 + $0x10] sm:$0xff] %v446
        %451 = vst [vmem:[#allocation2 + $0x18] sm:$0xff] %v447
        %452 = vrot.lane.b32.xlu0 %v379, 16
        %v453 = vpop.permute.xlu0 %452
        %454 = vrot.lane.b32.xlu0 %v383, 16
        %v455 = vpop.permute.xlu0 %454
        %456 = vrot.lane.b32.xlu0 %v380, 16
        %v457 = vpop.permute.xlu0 %456
        %458 = vrot.lane.b32.xlu0 %v384, 16
        %v459 = vpop.permute.xlu0 %458
        %460 = vrot.lane.b32.xlu0 %v381, 16
        %v461 = vpop.permute.xlu0 %460
        %462 = vrot.lane.b32.xlu0 %v385, 16
        %v463 = vpop.permute.xlu0 %462
        %464 = vrot.lane.b32.xlu0 %v382, 16
        %v465 = vpop.permute.xlu0 %464
        %466 = vrot.lane.b32.xlu0 %v386, 16
        %v467 = vpop.permute.xlu0 %466
        %vm468 = vcmp.lt.s32.totalorder %v404, 16
        %v469 = vsel %vm468, %v461, %v465
        %v470 = vsel %vm468, %v463, %v467
        %v471 = vsel %vm468, %v457, %v461
        %v472 = vsel %vm468, %v459, %v463
        %v473 = vsel %vm468, %v453, %v457
        %v474 = vsel %vm468, %v455, %v459
        %v475 = vsel %vm468, %v465, %v453
        %v476 = vsel %vm468, %v467, %v455
        %s477 = scalar_lea.vmem %s1, 1
        %v478 = vld [vmem:[%s477] ss:$8 sm:$0xf]
        %v480 = vlaneseq
        %v481 = vshrl.u32 %v480, 7
        %v482 = vsub.s32 0, %v481
        %v483 = vrot.slane %v478, %v482
        %v484 = vlaneseq
        %v485 = vshrl.u32 %v484, 7
        %v486 = vsub.s32 1, %v485
        %v487 = vrot.slane %v478, %v486
        %v488 = vlaneseq
        %v489 = vshrl.u32 %v488, 7
        %v490 = vsub.s32 2, %v489
        %v491 = vrot.slane %v478, %v490
        %v492 = vlaneseq
        %v493 = vshrl.u32 %v492, 7
        %v494 = vsub.s32 3, %v493
        %v495 = vrot.slane %v478, %v494
        %v500 = vmul.f32 %v475, %v483
        %v501 = vmul.f32 %v473, %v487
        %v502 = vmul.f32 %v471, %v491
        %v503 = vmul.f32 %v469, %v495
        %v504 = vmul.f32 %v476, %v483
        %v505 = vmul.f32 %v474, %v487
        %v506 = vmul.f32 %v472, %v491
        %v507 = vmul.f32 %v470, %v495
        %v508 = vpack.c.bf16 %v504, %v500
        %v509 = vpack.c.bf16 %v505, %v501
        %v510 = vpack.c.bf16 %v506, %v502
        %v511 = vpack.c.bf16 %v507, %v503
        %512 = vst [vmem:[#allocation2 + $0x20] sm:$0xff] %v508
        %513 = vst [vmem:[#allocation2 + $0x28] sm:$0xff] %v509
        %514 = vst [vmem:[#allocation2 + $0x30] sm:$0xff] %v510
        %515 = vst [vmem:[#allocation2 + $0x38] sm:$0xff] %v511
        %516 = vrot.lane.b32.xlu0 %v379, 15
        %v517 = vpop.permute.xlu0 %516
        %518 = vrot.lane.b32.xlu0 %v383, 15
        %v519 = vpop.permute.xlu0 %518
        %520 = vrot.lane.b32.xlu0 %v380, 15
        %v521 = vpop.permute.xlu0 %520
        %522 = vrot.lane.b32.xlu0 %v384, 15
        %v523 = vpop.permute.xlu0 %522
        %524 = vrot.lane.b32.xlu0 %v381, 15
        %v525 = vpop.permute.xlu0 %524
        %526 = vrot.lane.b32.xlu0 %v385, 15
        %v527 = vpop.permute.xlu0 %526
        %528 = vrot.lane.b32.xlu0 %v382, 15
        %v529 = vpop.permute.xlu0 %528
        %530 = vrot.lane.b32.xlu0 %v386, 15
        %v531 = vpop.permute.xlu0 %530
        %vm532 = vcmp.lt.s32.totalorder %v404, 15
        %v533 = vsel %vm532, %v525, %v529
        %v534 = vsel %vm532, %v527, %v531
        %v535 = vsel %vm532, %v521, %v525
        %v536 = vsel %vm532, %v523, %v527
        %v537 = vsel %vm532, %v517, %v521
        %v538 = vsel %vm532, %v519, %v523
        %v539 = vsel %vm532, %v529, %v517
        %v540 = vsel %vm532, %v531, %v519
        %s541 = scalar_lea.vmem %s1, 2
        %v542 = vld [vmem:[%s541] ss:$8 sm:$0xf]
        %v544 = vlaneseq
        %v545 = vshrl.u32 %v544, 7
        %v546 = vsub.s32 0, %v545
        %v547 = vrot.slane %v542, %v546
        %v548 = vlaneseq
        %v549 = vshrl.u32 %v548, 7
        %v550 = vsub.s32 1, %v549
        %v551 = vrot.slane %v542, %v550
        %v552 = vlaneseq
        %v553 = vshrl.u32 %v552, 7
        %v554 = vsub.s32 2, %v553
        %v555 = vrot.slane %v542, %v554
        %v556 = vlaneseq
        %v557 = vshrl.u32 %v556, 7
        %v558 = vsub.s32 3, %v557
        %v559 = vrot.slane %v542, %v558
        %v564 = vmul.f32 %v539, %v547
        %v565 = vmul.f32 %v537, %v551
        %v566 = vmul.f32 %v535, %v555
        %v567 = vmul.f32 %v533, %v559
        %v568 = vmul.f32 %v540, %v547
        %v569 = vmul.f32 %v538, %v551
        %v570 = vmul.f32 %v536, %v555
        %v571 = vmul.f32 %v534, %v559
        %v572 = vpack.c.bf16 %v568, %v564
        %v573 = vpack.c.bf16 %v569, %v565
        %v574 = vpack.c.bf16 %v570, %v566
        %v575 = vpack.c.bf16 %v571, %v567
        %576 = vst [vmem:[#allocation2 + $0x40] sm:$0xff] %v572
        %577 = vst [vmem:[#allocation2 + $0x48] sm:$0xff] %v573
        %578 = vst [vmem:[#allocation2 + $0x50] sm:$0xff] %v574
        %579 = vst [vmem:[#allocation2 + $0x58] sm:$0xff] %v575
        %580 = vrot.lane.b32.xlu0 %v379, 1
        %v581 = vpop.permute.xlu0 %580
        %582 = vrot.lane.b32.xlu0 %v383, 1
        %v583 = vpop.permute.xlu0 %582
        %584 = vrot.lane.b32.xlu0 %v380, 1
        %v585 = vpop.permute.xlu0 %584
        %586 = vrot.lane.b32.xlu0 %v384, 1
        %v587 = vpop.permute.xlu0 %586
        %588 = vrot.lane.b32.xlu0 %v381, 1
        %v589 = vpop.permute.xlu0 %588
        %590 = vrot.lane.b32.xlu0 %v385, 1
        %v591 = vpop.permute.xlu0 %590
        %592 = vrot.lane.b32.xlu0 %v382, 1
        %v593 = vpop.permute.xlu0 %592
        %594 = vrot.lane.b32.xlu0 %v386, 1
        %v595 = vpop.permute.xlu0 %594
        %vm596 = vcmp.lt.s32.totalorder %v404, 1
        %v597 = vsel %vm596, %v589, %v593
        %v598 = vsel %vm596, %v591, %v595
        %v599 = vsel %vm596, %v585, %v589
        %v600 = vsel %vm596, %v587, %v591
        %v601 = vsel %vm596, %v581, %v585
        %v602 = vsel %vm596, %v583, %v587
        %v603 = vsel %vm596, %v593, %v581
        %v604 = vsel %vm596, %v595, %v583
        %s605 = scalar_lea.vmem %s1, 3
        %v606 = vld [vmem:[%s605] ss:$8 sm:$0xf]
        %v608 = vlaneseq
        %v609 = vshrl.u32 %v608, 7
        %v610 = vsub.s32 0, %v609
        %v611 = vrot.slane %v606, %v610
        %v612 = vlaneseq
        %v613 = vshrl.u32 %v612, 7
        %v614 = vsub.s32 1, %v613
        %v615 = vrot.slane %v606, %v614
        %v616 = vlaneseq
        %v617 = vshrl.u32 %v616, 7
        %v618 = vsub.s32 2, %v617
        %v619 = vrot.slane %v606, %v618
        %v620 = vlaneseq
        %v621 = vshrl.u32 %v620, 7
        %v622 = vsub.s32 3, %v621
        %v623 = vrot.slane %v606, %v622
        %v628 = vmul.f32 %v603, %v611
        %v629 = vmul.f32 %v601, %v615
        %v630 = vmul.f32 %v599, %v619
        %v631 = vmul.f32 %v597, %v623
        %v632 = vmul.f32 %v604, %v611
        %v633 = vmul.f32 %v602, %v615
        %v634 = vmul.f32 %v600, %v619
        %v635 = vmul.f32 %v598, %v623
        %v636 = vpack.c.bf16 %v632, %v628
        %v637 = vpack.c.bf16 %v633, %v629
        %v638 = vpack.c.bf16 %v634, %v630
        %v639 = vpack.c.bf16 %v635, %v631
        %640 = vst [vmem:[#allocation2 + $0x60] sm:$0xff] %v636
        %641 = vst [vmem:[#allocation2 + $0x68] sm:$0xff] %v637
        %642 = vst [vmem:[#allocation2 + $0x70] sm:$0xff] %v638
        %643 = vst [vmem:[#allocation2 + $0x78] sm:$0xff] %v639
        %v644 = vpack.c.bf16 %v383, %v379
        %v645 = vpack.c.bf16 %v384, %v380
        %v646 = vpack.c.bf16 %v385, %v381
        %v647 = vpack.c.bf16 %v386, %v382
        %648 = vst [vmem:[#allocation2 + $0x80] sm:$0xff] %v644
        %649 = vst [vmem:[#allocation2 + $0x88] sm:$0xff] %v645
        %650 = vst [vmem:[#allocation2 + $0x90] sm:$0xff] %v646
        %651 = vst [vmem:[#allocation2 + $0x98] sm:$0xff] %v647
        %652 = vrot.lane.b32.xlu0 %v379, 127
        %v653 = vpop.permute.xlu0 %652
        %654 = vrot.lane.b32.xlu0 %v383, 127
        %v655 = vpop.permute.xlu0 %654
        %656 = vrot.lane.b32.xlu0 %v380, 127
        %v657 = vpop.permute.xlu0 %656
        %658 = vrot.lane.b32.xlu0 %v384, 127
        %v659 = vpop.permute.xlu0 %658
        %660 = vrot.lane.b32.xlu0 %v381, 127
        %v661 = vpop.permute.xlu0 %660
        %662 = vrot.lane.b32.xlu0 %v385, 127
        %v663 = vpop.permute.xlu0 %662
        %664 = vrot.lane.b32.xlu0 %v382, 127
        %v665 = vpop.permute.xlu0 %664
        %666 = vrot.lane.b32.xlu0 %v386, 127
        %v667 = vpop.permute.xlu0 %666
        %vm668 = vcmp.lt.s32.totalorder %v404, 127
        %v669 = vsel %vm668, %v661, %v665
        %v670 = vsel %vm668, %v663, %v667
        %v671 = vsel %vm668, %v657, %v661
        %v672 = vsel %vm668, %v659, %v663
        %v673 = vsel %vm668, %v653, %v657
        %v674 = vsel %vm668, %v655, %v659
        %v675 = vsel %vm668, %v665, %v653
        %v676 = vsel %vm668, %v667, %v655
        %s677 = scalar_lea.vmem %s1, 5
        %v678 = vld [vmem:[%s677] ss:$8 sm:$0xf]
        %v680 = vlaneseq
        %v681 = vshrl.u32 %v680, 7
        %v682 = vsub.s32 0, %v681
        %v683 = vrot.slane %v678, %v682
        %v684 = vlaneseq
        %v685 = vshrl.u32 %v684, 7
        %v686 = vsub.s32 1, %v685
        %v687 = vrot.slane %v678, %v686
        %v688 = vlaneseq
        %v689 = vshrl.u32 %v688, 7
        %v690 = vsub.s32 2, %v689
        %v691 = vrot.slane %v678, %v690
        %v692 = vlaneseq
        %v693 = vshrl.u32 %v692, 7
        %v694 = vsub.s32 3, %v693
        %v695 = vrot.slane %v678, %v694
        %v700 = vmul.f32 %v673, %v683
        %v701 = vmul.f32 %v671, %v687
        %v702 = vmul.f32 %v669, %v691
        %v703 = vmul.f32 %v675, %v695
        %v704 = vmul.f32 %v674, %v683
        %v705 = vmul.f32 %v672, %v687
        %v706 = vmul.f32 %v670, %v691
        %v707 = vmul.f32 %v676, %v695
        %v708 = vpack.c.bf16 %v704, %v700
        %v709 = vpack.c.bf16 %v705, %v701
        %v710 = vpack.c.bf16 %v706, %v702
        %v711 = vpack.c.bf16 %v707, %v703
        %712 = vst [vmem:[#allocation2 + $0xa0] sm:$0xff] %v708
        %713 = vst [vmem:[#allocation2 + $0xa8] sm:$0xff] %v709
        %714 = vst [vmem:[#allocation2 + $0xb0] sm:$0xff] %v710
        %715 = vst [vmem:[#allocation2 + $0xb8] sm:$0xff] %v711
        %716 = vrot.lane.b32.xlu0 %v379, 113
        %v717 = vpop.permute.xlu0 %716
        %718 = vrot.lane.b32.xlu0 %v383, 113
        %v719 = vpop.permute.xlu0 %718
        %720 = vrot.lane.b32.xlu0 %v380, 113
        %v721 = vpop.permute.xlu0 %720
        %722 = vrot.lane.b32.xlu0 %v384, 113
        %v723 = vpop.permute.xlu0 %722
        %724 = vrot.lane.b32.xlu0 %v381, 113
        %v725 = vpop.permute.xlu0 %724
        %726 = vrot.lane.b32.xlu0 %v385, 113
        %v727 = vpop.permute.xlu0 %726
        %728 = vrot.lane.b32.xlu0 %v382, 113
        %v729 = vpop.permute.xlu0 %728
        %730 = vrot.lane.b32.xlu0 %v386, 113
        %v731 = vpop.permute.xlu0 %730
        %vm732 = vcmp.lt.s32.totalorder %v404, 113
        %v733 = vsel %vm732, %v725, %v729
        %v734 = vsel %vm732, %v727, %v731
        %v735 = vsel %vm732, %v721, %v725
        %v736 = vsel %vm732, %v723, %v727
        %v737 = vsel %vm732, %v717, %v721
        %v738 = vsel %vm732, %v719, %v723
        %v739 = vsel %vm732, %v729, %v717
        %v740 = vsel %vm732, %v731, %v719
        %s741 = scalar_lea.vmem %s1, 6
        %v742 = vld [vmem:[%s741] ss:$8 sm:$0xf]
        %v744 = vlaneseq
        %v745 = vshrl.u32 %v744, 7
        %v746 = vsub.s32 0, %v745
        %v747 = vrot.slane %v742, %v746
        %v748 = vlaneseq
        %v749 = vshrl.u32 %v748, 7
        %v750 = vsub.s32 1, %v749
        %v751 = vrot.slane %v742, %v750
        %v752 = vlaneseq
        %v753 = vshrl.u32 %v752, 7
        %v754 = vsub.s32 2, %v753
        %v755 = vrot.slane %v742, %v754
        %v756 = vlaneseq
        %v757 = vshrl.u32 %v756, 7
        %v758 = vsub.s32 3, %v757
        %v759 = vrot.slane %v742, %v758
        %v764 = vmul.f32 %v737, %v747
        %v765 = vmul.f32 %v735, %v751
        %v766 = vmul.f32 %v733, %v755
        %v767 = vmul.f32 %v739, %v759
        %v768 = vmul.f32 %v738, %v747
        %v769 = vmul.f32 %v736, %v751
        %v770 = vmul.f32 %v734, %v755
        %v771 = vmul.f32 %v740, %v759
        %v772 = vpack.c.bf16 %v768, %v764
        %v773 = vpack.c.bf16 %v769, %v765
        %v774 = vpack.c.bf16 %v770, %v766
        %v775 = vpack.c.bf16 %v771, %v767
        %776 = vst [vmem:[#allocation2 + $0xc0] sm:$0xff] %v772
        %777 = vst [vmem:[#allocation2 + $0xc8] sm:$0xff] %v773
        %778 = vst [vmem:[#allocation2 + $0xd0] sm:$0xff] %v774
        %779 = vst [vmem:[#allocation2 + $0xd8] sm:$0xff] %v775
        %780 = vrot.lane.b32.xlu0 %v379, 112
        %v781 = vpop.permute.xlu0 %780
        %782 = vrot.lane.b32.xlu0 %v383, 112
        %v783 = vpop.permute.xlu0 %782
        %784 = vrot.lane.b32.xlu0 %v380, 112
        %v785 = vpop.permute.xlu0 %784
        %786 = vrot.lane.b32.xlu0 %v384, 112
        %v787 = vpop.permute.xlu0 %786
        %788 = vrot.lane.b32.xlu0 %v381, 112
        %v789 = vpop.permute.xlu0 %788
        %790 = vrot.lane.b32.xlu0 %v385, 112
        %v791 = vpop.permute.xlu0 %790
        %792 = vrot.lane.b32.xlu0 %v382, 112
        %v793 = vpop.permute.xlu0 %792
        %794 = vrot.lane.b32.xlu0 %v386, 112
        %v795 = vpop.permute.xlu0 %794
        %vm796 = vcmp.lt.s32.totalorder %v404, 112
        %v797 = vsel %vm796, %v789, %v793
        %v798 = vsel %vm796, %v791, %v795
        %v799 = vsel %vm796, %v785, %v789
        %v800 = vsel %vm796, %v787, %v791
        %v801 = vsel %vm796, %v781, %v785
        %v802 = vsel %vm796, %v783, %v787
        %v803 = vsel %vm796, %v793, %v781
        %v804 = vsel %vm796, %v795, %v783
        %s805 = scalar_lea.vmem %s1, 7
        %v806 = vld [vmem:[%s805] ss:$8 sm:$0xf]
        %v808 = vlaneseq
        %v809 = vshrl.u32 %v808, 7
        %v810 = vsub.s32 0, %v809
        %v811 = vrot.slane %v806, %v810
        %v812 = vlaneseq
        %v813 = vshrl.u32 %v812, 7
        %v814 = vsub.s32 1, %v813
        %v815 = vrot.slane %v806, %v814
        %v816 = vlaneseq
        %v817 = vshrl.u32 %v816, 7
        %v818 = vsub.s32 2, %v817
        %v819 = vrot.slane %v806, %v818
        %v820 = vlaneseq
        %v821 = vshrl.u32 %v820, 7
        %v822 = vsub.s32 3, %v821
        %v823 = vrot.slane %v806, %v822
        %v828 = vmul.f32 %v801, %v811
        %v829 = vmul.f32 %v799, %v815
        %v830 = vmul.f32 %v797, %v819
        %v831 = vmul.f32 %v803, %v823
        %v832 = vmul.f32 %v802, %v811
        %v833 = vmul.f32 %v800, %v815
        %v834 = vmul.f32 %v798, %v819
        %v835 = vmul.f32 %v804, %v823
        %v836 = vpack.c.bf16 %v832, %v828
        %v837 = vpack.c.bf16 %v833, %v829
        %v838 = vpack.c.bf16 %v834, %v830
        %v839 = vpack.c.bf16 %v835, %v831
        %840 = vst [vmem:[#allocation2 + $0xe0] sm:$0xff] %v836
        %841 = vst [vmem:[#allocation2 + $0xe8] sm:$0xff] %v837
        %842 = vst [vmem:[#allocation2 + $0xf0] sm:$0xff] %v838
        %843 = vst [vmem:[#allocation2 + $0xf8] sm:$0xff] %v839
        %844 = vrot.lane.b32.xlu0 %v379, 111
        %v845 = vpop.permute.xlu0 %844
        %846 = vrot.lane.b32.xlu0 %v383, 111
        %v847 = vpop.permute.xlu0 %846
        %848 = vrot.lane.b32.xlu0 %v380, 111
        %v849 = vpop.permute.xlu0 %848
        %850 = vrot.lane.b32.xlu0 %v384, 111
        %v851 = vpop.permute.xlu0 %850
        %852 = vrot.lane.b32.xlu0 %v381, 111
        %v853 = vpop.permute.xlu0 %852
        %854 = vrot.lane.b32.xlu0 %v385, 111
        %v855 = vpop.permute.xlu0 %854
        %856 = vrot.lane.b32.xlu0 %v382, 111
        %v857 = vpop.permute.xlu0 %856
        %858 = vrot.lane.b32.xlu0 %v386, 111
        %v859 = vpop.permute.xlu0 %858
        %vm860 = vcmp.lt.s32.totalorder %v404, 111
        %v861 = vsel %vm860, %v853, %v857
        %v862 = vsel %vm860, %v855, %v859
        %v863 = vsel %vm860, %v849, %v853
        %v864 = vsel %vm860, %v851, %v855
        %v865 = vsel %vm860, %v845, %v849
        %v866 = vsel %vm860, %v847, %v851
        %v867 = vsel %vm860, %v857, %v845
        %v868 = vsel %vm860, %v859, %v847
        %s869 = scalar_lea.vmem %s1, 32
        %v870 = vld [vmem:[%s869] ss:$8 sm:$0xf]
        %v872 = vlaneseq
        %v873 = vshrl.u32 %v872, 7
        %v874 = vsub.s32 0, %v873
        %v875 = vrot.slane %v870, %v874
        %v876 = vlaneseq
        %v877 = vshrl.u32 %v876, 7
        %v878 = vsub.s32 1, %v877
        %v879 = vrot.slane %v870, %v878
        %v880 = vlaneseq
        %v881 = vshrl.u32 %v880, 7
        %v882 = vsub.s32 2, %v881
        %v883 = vrot.slane %v870, %v882
        %v884 = vlaneseq
        %v885 = vshrl.u32 %v884, 7
        %v886 = vsub.s32 3, %v885
        %v887 = vrot.slane %v870, %v886
        %v892 = vmul.f32 %v865, %v875
        %v893 = vmul.f32 %v863, %v879
        %v894 = vmul.f32 %v861, %v883
        %v895 = vmul.f32 %v867, %v887
        %v896 = vmul.f32 %v866, %v875
        %v897 = vmul.f32 %v864, %v879
        %v898 = vmul.f32 %v862, %v883
        %v899 = vmul.f32 %v868, %v887
        %v900 = vpack.c.bf16 %v896, %v892
        %v901 = vpack.c.bf16 %v897, %v893
        %v902 = vpack.c.bf16 %v898, %v894
        %v903 = vpack.c.bf16 %v899, %v895
        %904 = vst [vmem:[#allocation2 + $0x100] sm:$0xff] %v900
        %905 = vst [vmem:[#allocation2 + $0x108] sm:$0xff] %v901
        %906 = vst [vmem:[#allocation2 + $0x110] sm:$0xff] %v902
        %907 = vst [vmem:[#allocation2 + $0x118] sm:$0xff] %v903
        %v908 = vld [vmem:[%s2] sm:$0xff]
        %v909 = vld [vmem:[%s2 + $0x8] sm:$0xff]
        %v910 = vld [vmem:[#allocation2] sm:$0xff]
        %v911 = vld [vmem:[#allocation2 + $0x8] sm:$0xff]
        %v912 = vld [vmem:[#allocation2 + $0x10] sm:$0xff]
        %v913 = vld [vmem:[#allocation2 + $0x18] sm:$0xff]
        %v914 = vld [vmem:[#allocation2 + $0x20] sm:$0xff]
        %v915 = vld [vmem:[#allocation2 + $0x28] sm:$0xff]
        %v916 = vld [vmem:[#allocation2 + $0x30] sm:$0xff]
        %v917 = vld [vmem:[#allocation2 + $0x38] sm:$0xff]
        %v918 = vld [vmem:[#allocation2 + $0x40] sm:$0xff]
        %v919 = vld [vmem:[#allocation2 + $0x48] sm:$0xff]
        %v920 = vld [vmem:[#allocation2 + $0x50] sm:$0xff]
        %v921 = vld [vmem:[#allocation2 + $0x58] sm:$0xff]
        %v922 = vld [vmem:[#allocation2 + $0x60] sm:$0xff]
        %v923 = vld [vmem:[#allocation2 + $0x68] sm:$0xff]
        %v924 = vld [vmem:[#allocation2 + $0x70] sm:$0xff]
        %v925 = vld [vmem:[#allocation2 + $0x78] sm:$0xff]
        %v926 = vld [vmem:[#allocation2 + $0x80] sm:$0xff]
        %v927 = vld [vmem:[#allocation2 + $0x88] sm:$0xff]
        %v928 = vld [vmem:[#allocation2 + $0x90] sm:$0xff]
        %v929 = vld [vmem:[#allocation2 + $0x98] sm:$0xff]
        %v930 = vld [vmem:[#allocation2 + $0xa0] sm:$0xff]
        %v931 = vld [vmem:[#allocation2 + $0xa8] sm:$0xff]
        %v932 = vld [vmem:[#allocation2 + $0xb0] sm:$0xff]
        %v933 = vld [vmem:[#allocation2 + $0xb8] sm:$0xff]
        %v934 = vld [vmem:[#allocation2 + $0xc0] sm:$0xff]
        %v935 = vld [vmem:[#allocation2 + $0xc8] sm:$0xff]
        %v936 = vld [vmem:[#allocation2 + $0xd0] sm:$0xff]
        %v937 = vld [vmem:[#allocation2 + $0xd8] sm:$0xff]
        %v938 = vld [vmem:[#allocation2 + $0xe0] sm:$0xff]
        %v939 = vld [vmem:[#allocation2 + $0xe8] sm:$0xff]
        %v940 = vld [vmem:[#allocation2 + $0xf0] sm:$0xff]
        %v941 = vld [vmem:[#allocation2 + $0xf8] sm:$0xff]
        %v942 = vld [vmem:[#allocation2 + $0x100] sm:$0xff]
        %v943 = vld [vmem:[#allocation2 + $0x108] sm:$0xff]
        %v944 = vld [vmem:[#allocation2 + $0x110] sm:$0xff]
        %v945 = vld [vmem:[#allocation2 + $0x118] sm:$0xff]
        %v946 = vld [vmem:[%s3] sm:$0xff]
        %v947 = vld [vmem:[%s3 + $0x8] sm:$0xff]
        %949 = vset.pattern.permute.xlu0 0
        %950 = vperm.xlu0 %949, %v946
        %v951 = vpop.permute.xlu0 %950
        %954 = vset.pattern.permute.xlu0 0
        %955 = vperm.xlu0 %954, %v947
        %v956 = vpop.permute.xlu0 %955
        %v960 = vunpack.c.l.b16 %v908
        %v961 = vunpack.c.h.b16 %v908
        %v962 = vunpack.c.l.b16 %v909
        %v963 = vunpack.c.h.b16 %v909
        %v964 = vpack.c.b16 %v962, %v960
        %v965 = vpack.c.b16 %v963, %v961
        %vm967 = vcmask 130048
        %v969 = vsel %vm967, %v965, 0
        %971 = vmatprep.subr.bf16.mxu0 %v911
        %972 = vmatpush1.bf16.msra.mxu0 %v910
        %973 = vmatprep.subr.bf16.mxu0 %v915
        %974 = vmatpush1.bf16.msra.mxu0 %v914
        %975 = vmatprep.subr.bf16.mxu0 %v919
        %976 = vmatpush1.bf16.msra.mxu0 %v918
        %977 = vmatprep.subr.bf16.mxu0 %v923
        %978 = vmatpush1.bf16.msra.mxu0 %v922
        %979 = vmatprep.subr.bf16.mxu0 %v927
        %980 = vmatpush1.bf16.msra.mxu0 %v926
        %981 = vmatprep.subr.bf16.mxu0 %v931
        %982 = vmatpush1.bf16.msra.mxu0 %v930
        %983 = vmatprep.subr.bf16.mxu0 %v935
        %984 = vmatpush1.bf16.msra.mxu0 %v934
        %985 = vmatprep.subr.bf16.mxu0 %v939
        %986 = vmatpush1.bf16.msra.mxu0 %v938
        %987 = vmatprep.subr.bf16.mxu0 %v943
        %988 = vmatpush1.bf16.msra.mxu0 %v942
        %989 = vmatprep.subr.bf16.mxu0 0
        %990 = vmatpush1.bf16.msra.mxu0 0
        %991 = vmatprep.subr.bf16.mxu0 0
        %992 = vmatpush1.bf16.msra.mxu0 0
        %993 = vmatprep.subr.bf16.mxu0 0
        %994 = vmatpush1.bf16.msra.mxu0 0
        %995 = vmatprep.subr.bf16.mxu0 0
        %996 = vmatpush1.bf16.msra.mxu0 0
        %997 = vmatprep.subr.bf16.mxu0 0
        %998 = vmatpush1.bf16.msra.mxu0 0
        %999 = vmatprep.subr.bf16.mxu0 0
        %1000 = vmatpush1.bf16.msra.mxu0 0
        %1001 = vmatprep.subr.bf16.mxu0 0
        %1002 = vmatpush1.bf16.msra.mxu0 0
        %1003 = vmatprep.mubr.bf16.mxu0 %v969
        %1004 = vmatmul.mubr.bf16.gmra.mrb[0].mxu0 %v964
        %v1005 = vpop.f32.mrb[0].mxu0
        %v1006 = vadd.f32 %v951, %v1005
        %v1007 = vpop.f32.mrb[0].mxu0
        %v1008 = vadd.f32 %v951, %v1007
        %v1009 = vpop.f32.mrb[0].mxu0
        %v1010 = vadd.f32 %v956, %v1009
        %v1011 = vpop.f32.mrb[0].mxu0
        %v1012 = vadd.f32 %v956, %v1011
        %1013 = vdwg.mxu0
        %1014 = vmatprep.subr.bf16.mxu0 %v913
        %1015 = vmatpush1.bf16.msra.mxu0 %v912
        %1016 = vmatprep.subr.bf16.mxu0 %v917
        %1017 = vmatpush1.bf16.msra.mxu0 %v916
        %1018 = vmatprep.subr.bf16.mxu0 %v921
        %1019 = vmatpush1.bf16.msra.mxu0 %v920
        %1020 = vmatprep.subr.bf16.mxu0 %v925
        %1021 = vmatpush1.bf16.msra.mxu0 %v924
        %1022 = vmatprep.subr.bf16.mxu0 %v929
        %1023 = vmatpush1.bf16.msra.mxu0 %v928
        %1024 = vmatprep.subr.bf16.mxu0 %v933
        %1025 = vmatpush1.bf16.msra.mxu0 %v932
        %1026 = vmatprep.subr.bf16.mxu0 %v937
        %1027 = vmatpush1.bf16.msra.mxu0 %v936
        %1028 = vmatprep.subr.bf16.mxu0 %v941
        %1029 = vmatpush1.bf16.msra.mxu0 %v940
        %1030 = vmatprep.subr.bf16.mxu0 %v945
        %1031 = vmatpush1.bf16.msra.mxu0 %v944
        %1032 = vmatprep.subr.bf16.mxu0 0
        %1033 = vmatpush1.bf16.msra.mxu0 0
        %1034 = vmatprep.subr.bf16.mxu0 0
        %1035 = vmatpush1.bf16.msra.mxu0 0
        %1036 = vmatprep.subr.bf16.mxu0 0
        %1037 = vmatpush1.bf16.msra.mxu0 0
        %1038 = vmatprep.subr.bf16.mxu0 0
        %1039 = vmatpush1.bf16.msra.mxu0 0
        %1040 = vmatprep.subr.bf16.mxu0 0
        %1041 = vmatpush1.bf16.msra.mxu0 0
        %1042 = vmatprep.subr.bf16.mxu0 0
        %1043 = vmatpush1.bf16.msra.mxu0 0
        %1044 = vmatprep.subr.bf16.mxu0 0
        %1045 = vmatpush1.bf16.msra.mxu0 0
        %1046 = vmatprep.mubr.bf16.mxu0 %v969
        %1047 = vmatmul.mubr.bf16.gmra.mrb[0].mxu0 %v964
        %v1048 = vpop.f32.mrb[0].mxu0
        %v1049 = vadd.f32 %v951, %v1048
        %v1050 = vpop.f32.mrb[0].mxu0
        %v1051 = vadd.f32 %v951, %v1050
        %v1052 = vpop.f32.mrb[0].mxu0
        %v1053 = vadd.f32 %v956, %v1052
        %v1054 = vpop.f32.mrb[0].mxu0
        %v1055 = vadd.f32 %v956, %v1054
        %1056 = vdwg.mxu0
        %v1057 = vmax.f32 %v1006, 0.0
        %v1058 = vmax.f32 %v1008, 0.0
        %v1059 = vmax.f32 %v1049, 0.0
        %v1060 = vmax.f32 %v1051, 0.0
        %v1061 = vmax.f32 %v1010, 0.0
        %v1062 = vmax.f32 %v1012, 0.0
        %v1063 = vmax.f32 %v1053, 0.0
        %v1064 = vmax.f32 %v1055, 0.0
        %1065 = vrot.lane.b32.xlu0 %v1057, 17
        %v1066 = vpop.permute.xlu0 %1065
        %1067 = vrot.lane.b32.xlu0 %v1061, 17
        %v1068 = vpop.permute.xlu0 %1067
        %1069 = vrot.lane.b32.xlu0 %v1058, 17
        %v1070 = vpop.permute.xlu0 %1069
        %1071 = vrot.lane.b32.xlu0 %v1062, 17
        %v1072 = vpop.permute.xlu0 %1071
        %1073 = vrot.lane.b32.xlu0 %v1059, 17
        %v1074 = vpop.permute.xlu0 %1073
        %1075 = vrot.lane.b32.xlu0 %v1063, 17
        %v1076 = vpop.permute.xlu0 %1075
        %1077 = vrot.lane.b32.xlu0 %v1060, 17
        %v1078 = vpop.permute.xlu0 %1077
        %1079 = vrot.lane.b32.xlu0 %v1064, 17
        %v1080 = vpop.permute.xlu0 %1079
        %v1081 = vsel %vm405, %v1074, %v1078
        %v1082 = vsel %vm405, %v1076, %v1080
        %v1083 = vsel %vm405, %v1070, %v1074
        %v1084 = vsel %vm405, %v1072, %v1076
        %v1085 = vsel %vm405, %v1066, %v1070
        %v1086 = vsel %vm405, %v1068, %v1072
        %v1087 = vsel %vm405, %v1078, %v1066
        %v1088 = vsel %vm405, %v1080, %v1068
        %v1089 = vld [vmem:[%s1] ss:$8 sm:$0xf]
        %v1091 = vlaneseq
        %v1092 = vshrl.u32 %v1091, 7
        %v1093 = vsub.s32 0, %v1092
        %v1094 = vrot.slane %v1089, %v1093
        %v1095 = vlaneseq
        %v1096 = vshrl.u32 %v1095, 7
        %v1097 = vsub.s32 1, %v1096
        %v1098 = vrot.slane %v1089, %v1097
        %v1099 = vlaneseq
        %v1100 = vshrl.u32 %v1099, 7
        %v1101 = vsub.s32 2, %v1100
        %v1102 = vrot.slane %v1089, %v1101
        %v1103 = vlaneseq
        %v1104 = vshrl.u32 %v1103, 7
        %v1105 = vsub.s32 3, %v1104
        %v1106 = vrot.slane %v1089, %v1105
        %v1111 = vmul.f32 %v1087, %v1094
        %v1112 = vmul.f32 %v1085, %v1098
        %v1113 = vmul.f32 %v1083, %v1102
        %v1114 = vmul.f32 %v1081, %v1106
        %v1115 = vmul.f32 %v1088, %v1094
        %v1116 = vmul.f32 %v1086, %v1098
        %v1117 = vmul.f32 %v1084, %v1102
        %v1118 = vmul.f32 %v1082, %v1106
        %v1119 = vpack.c.bf16 %v1115, %v1111
        %v1120 = vpack.c.bf16 %v1116, %v1112
        %v1121 = vpack.c.bf16 %v1117, %v1113
        %v1122 = vpack.c.bf16 %v1118, %v1114
        %1123 = vst [vmem:[#allocation2] sm:$0xff] %v1119
        %1124 = vst [vmem:[#allocation2 + $0x8] sm:$0xff] %v1120
        %1125 = vst [vmem:[#allocation2 + $0x10] sm:$0xff] %v1121
        %1126 = vst [vmem:[#allocation2 + $0x18] sm:$0xff] %v1122
        %1127 = vrot.lane.b32.xlu0 %v1057, 16
        %v1128 = vpop.permute.xlu0 %1127
        %1129 = vrot.lane.b32.xlu0 %v1061, 16
        %v1130 = vpop.permute.xlu0 %1129
        %1131 = vrot.lane.b32.xlu0 %v1058, 16
        %v1132 = vpop.permute.xlu0 %1131
        %1133 = vrot.lane.b32.xlu0 %v1062, 16
        %v1134 = vpop.permute.xlu0 %1133
        %1135 = vrot.lane.b32.xlu0 %v1059, 16
        %v1136 = vpop.permute.xlu0 %1135
        %1137 = vrot.lane.b32.xlu0 %v1063, 16
        %v1138 = vpop.permute.xlu0 %1137
        %1139 = vrot.lane.b32.xlu0 %v1060, 16
        %v1140 = vpop.permute.xlu0 %1139
        %1141 = vrot.lane.b32.xlu0 %v1064, 16
        %v1142 = vpop.permute.xlu0 %1141
        %v1143 = vsel %vm468, %v1136, %v1140
        %v1144 = vsel %vm468, %v1138, %v1142
        %v1145 = vsel %vm468, %v1132, %v1136
        %v1146 = vsel %vm468, %v1134, %v1138
        %v1147 = vsel %vm468, %v1128, %v1132
        %v1148 = vsel %vm468, %v1130, %v1134
        %v1149 = vsel %vm468, %v1140, %v1128
        %v1150 = vsel %vm468, %v1142, %v1130
        %v1151 = vld [vmem:[%s477] ss:$8 sm:$0xf]
        %v1153 = vlaneseq
        %v1154 = vshrl.u32 %v1153, 7
        %v1155 = vsub.s32 0, %v1154
        %v1156 = vrot.slane %v1151, %v1155
        %v1157 = vlaneseq
        %v1158 = vshrl.u32 %v1157, 7
        %v1159 = vsub.s32 1, %v1158
        %v1160 = vrot.slane %v1151, %v1159
        %v1161 = vlaneseq
        %v1162 = vshrl.u32 %v1161, 7
        %v1163 = vsub.s32 2, %v1162
        %v1164 = vrot.slane %v1151, %v1163
        %v1165 = vlaneseq
        %v1166 = vshrl.u32 %v1165, 7
        %v1167 = vsub.s32 3, %v1166
        %v1168 = vrot.slane %v1151, %v1167
        %v1173 = vmul.f32 %v1149, %v1156
        %v1174 = vmul.f32 %v1147, %v1160
        %v1175 = vmul.f32 %v1145, %v1164
        %v1176 = vmul.f32 %v1143, %v1168
        %v1177 = vmul.f32 %v1150, %v1156
        %v1178 = vmul.f32 %v1148, %v1160
        %v1179 = vmul.f32 %v1146, %v1164
        %v1180 = vmul.f32 %v1144, %v1168
        %v1181 = vpack.c.bf16 %v1177, %v1173
        %v1182 = vpack.c.bf16 %v1178, %v1174
        %v1183 = vpack.c.bf16 %v1179, %v1175
        %v1184 = vpack.c.bf16 %v1180, %v1176
        %1185 = vst [vmem:[#allocation2 + $0x20] sm:$0xff] %v1181
        %1186 = vst [vmem:[#allocation2 + $0x28] sm:$0xff] %v1182
        %1187 = vst [vmem:[#allocation2 + $0x30] sm:$0xff] %v1183
        %1188 = vst [vmem:[#allocation2 + $0x38] sm:$0xff] %v1184
        %1189 = vrot.lane.b32.xlu0 %v1057, 15
        %v1190 = vpop.permute.xlu0 %1189
        %1191 = vrot.lane.b32.xlu0 %v1061, 15
        %v1192 = vpop.permute.xlu0 %1191
        %1193 = vrot.lane.b32.xlu0 %v1058, 15
        %v1194 = vpop.permute.xlu0 %1193
        %1195 = vrot.lane.b32.xlu0 %v1062, 15
        %v1196 = vpop.permute.xlu0 %1195
        %1197 = vrot.lane.b32.xlu0 %v1059, 15
        %v1198 = vpop.permute.xlu0 %1197
        %1199 = vrot.lane.b32.xlu0 %v1063, 15
        %v1200 = vpop.permute.xlu0 %1199
        %1201 = vrot.lane.b32.xlu0 %v1060, 15
        %v1202 = vpop.permute.xlu0 %1201
        %1203 = vrot.lane.b32.xlu0 %v1064, 15
        %v1204 = vpop.permute.xlu0 %1203
        %v1205 = vsel %vm532, %v1198, %v1202
        %v1206 = vsel %vm532, %v1200, %v1204
        %v1207 = vsel %vm532, %v1194, %v1198
        %v1208 = vsel %vm532, %v1196, %v1200
        %v1209 = vsel %vm532, %v1190, %v1194
        %v1210 = vsel %vm532, %v1192, %v1196
        %v1211 = vsel %vm532, %v1202, %v1190
        %v1212 = vsel %vm532, %v1204, %v1192
        %v1213 = vld [vmem:[%s541] ss:$8 sm:$0xf]
        %v1215 = vlaneseq
        %v1216 = vshrl.u32 %v1215, 7
        %v1217 = vsub.s32 0, %v1216
        %v1218 = vrot.slane %v1213, %v1217
        %v1219 = vlaneseq
        %v1220 = vshrl.u32 %v1219, 7
        %v1221 = vsub.s32 1, %v1220
        %v1222 = vrot.slane %v1213, %v1221
        %v1223 = vlaneseq
        %v1224 = vshrl.u32 %v1223, 7
        %v1225 = vsub.s32 2, %v1224
        %v1226 = vrot.slane %v1213, %v1225
        %v1227 = vlaneseq
        %v1228 = vshrl.u32 %v1227, 7
        %v1229 = vsub.s32 3, %v1228
        %v1230 = vrot.slane %v1213, %v1229
        %v1235 = vmul.f32 %v1211, %v1218
        %v1236 = vmul.f32 %v1209, %v1222
        %v1237 = vmul.f32 %v1207, %v1226
        %v1238 = vmul.f32 %v1205, %v1230
        %v1239 = vmul.f32 %v1212, %v1218
        %v1240 = vmul.f32 %v1210, %v1222
        %v1241 = vmul.f32 %v1208, %v1226
        %v1242 = vmul.f32 %v1206, %v1230
        %v1243 = vpack.c.bf16 %v1239, %v1235
        %v1244 = vpack.c.bf16 %v1240, %v1236
        %v1245 = vpack.c.bf16 %v1241, %v1237
        %v1246 = vpack.c.bf16 %v1242, %v1238
        %1247 = vst [vmem:[#allocation2 + $0x40] sm:$0xff] %v1243
        %1248 = vst [vmem:[#allocation2 + $0x48] sm:$0xff] %v1244
        %1249 = vst [vmem:[#allocation2 + $0x50] sm:$0xff] %v1245
        %1250 = vst [vmem:[#allocation2 + $0x58] sm:$0xff] %v1246
        %1251 = vrot.lane.b32.xlu0 %v1057, 1
        %v1252 = vpop.permute.xlu0 %1251
        %1253 = vrot.lane.b32.xlu0 %v1061, 1
        %v1254 = vpop.permute.xlu0 %1253
        %1255 = vrot.lane.b32.xlu0 %v1058, 1
        %v1256 = vpop.permute.xlu0 %1255
        %1257 = vrot.lane.b32.xlu0 %v1062, 1
        %v1258 = vpop.permute.xlu0 %1257
        %1259 = vrot.lane.b32.xlu0 %v1059, 1
        %v1260 = vpop.permute.xlu0 %1259
        %1261 = vrot.lane.b32.xlu0 %v1063, 1
        %v1262 = vpop.permute.xlu0 %1261
        %1263 = vrot.lane.b32.xlu0 %v1060, 1
        %v1264 = vpop.permute.xlu0 %1263
        %1265 = vrot.lane.b32.xlu0 %v1064, 1
        %v1266 = vpop.permute.xlu0 %1265
        %v1267 = vsel %vm596, %v1260, %v1264
        %v1268 = vsel %vm596, %v1262, %v1266
        %v1269 = vsel %vm596, %v1256, %v1260
        %v1270 = vsel %vm596, %v1258, %v1262
        %v1271 = vsel %vm596, %v1252, %v1256
        %v1272 = vsel %vm596, %v1254, %v1258
        %v1273 = vsel %vm596, %v1264, %v1252
        %v1274 = vsel %vm596, %v1266, %v1254
        %v1275 = vld [vmem:[%s605] ss:$8 sm:$0xf]
        %v1277 = vlaneseq
        %v1278 = vshrl.u32 %v1277, 7
        %v1279 = vsub.s32 0, %v1278
        %v1280 = vrot.slane %v1275, %v1279
        %v1281 = vlaneseq
        %v1282 = vshrl.u32 %v1281, 7
        %v1283 = vsub.s32 1, %v1282
        %v1284 = vrot.slane %v1275, %v1283
        %v1285 = vlaneseq
        %v1286 = vshrl.u32 %v1285, 7
        %v1287 = vsub.s32 2, %v1286
        %v1288 = vrot.slane %v1275, %v1287
        %v1289 = vlaneseq
        %v1290 = vshrl.u32 %v1289, 7
        %v1291 = vsub.s32 3, %v1290
        %v1292 = vrot.slane %v1275, %v1291
        %v1297 = vmul.f32 %v1273, %v1280
        %v1298 = vmul.f32 %v1271, %v1284
        %v1299 = vmul.f32 %v1269, %v1288
        %v1300 = vmul.f32 %v1267, %v1292
        %v1301 = vmul.f32 %v1274, %v1280
        %v1302 = vmul.f32 %v1272, %v1284
        %v1303 = vmul.f32 %v1270, %v1288
        %v1304 = vmul.f32 %v1268, %v1292
        %v1305 = vpack.c.bf16 %v1301, %v1297
        %v1306 = vpack.c.bf16 %v1302, %v1298
        %v1307 = vpack.c.bf16 %v1303, %v1299
        %v1308 = vpack.c.bf16 %v1304, %v1300
        %1309 = vst [vmem:[#allocation2 + $0x60] sm:$0xff] %v1305
        %1310 = vst [vmem:[#allocation2 + $0x68] sm:$0xff] %v1306
        %1311 = vst [vmem:[#allocation2 + $0x70] sm:$0xff] %v1307
        %1312 = vst [vmem:[#allocation2 + $0x78] sm:$0xff] %v1308
        %v1313 = vpack.c.bf16 %v1061, %v1057
        %v1314 = vpack.c.bf16 %v1062, %v1058
        %v1315 = vpack.c.bf16 %v1063, %v1059
        %v1316 = vpack.c.bf16 %v1064, %v1060
        %1317 = vst [vmem:[#allocation2 + $0x80] sm:$0xff] %v1313
        %1318 = vst [vmem:[#allocation2 + $0x88] sm:$0xff] %v1314
        %1319 = vst [vmem:[#allocation2 + $0x90] sm:$0xff] %v1315
        %1320 = vst [vmem:[#allocation2 + $0x98] sm:$0xff] %v1316
        %1321 = vrot.lane.b32.xlu0 %v1057, 127
        %v1322 = vpop.permute.xlu0 %1321
        %1323 = vrot.lane.b32.xlu0 %v1061, 127
        %v1324 = vpop.permute.xlu0 %1323
        %1325 = vrot.lane.b32.xlu0 %v1058, 127
        %v1326 = vpop.permute.xlu0 %1325
        %1327 = vrot.lane.b32.xlu0 %v1062, 127
        %v1328 = vpop.permute.xlu0 %1327
        %1329 = vrot.lane.b32.xlu0 %v1059, 127
        %v1330 = vpop.permute.xlu0 %1329
        %1331 = vrot.lane.b32.xlu0 %v1063, 127
        %v1332 = vpop.permute.xlu0 %1331
        %1333 = vrot.lane.b32.xlu0 %v1060, 127
        %v1334 = vpop.permute.xlu0 %1333
        %1335 = vrot.lane.b32.xlu0 %v1064, 127
        %v1336 = vpop.permute.xlu0 %1335
        %v1337 = vsel %vm668, %v1330, %v1334
        %v1338 = vsel %vm668, %v1332, %v1336
        %v1339 = vsel %vm668, %v1326, %v1330
        %v1340 = vsel %vm668, %v1328, %v1332
        %v1341 = vsel %vm668, %v1322, %v1326
        %v1342 = vsel %vm668, %v1324, %v1328
        %v1343 = vsel %vm668, %v1334, %v1322
        %v1344 = vsel %vm668, %v1336, %v1324
        %v1345 = vld [vmem:[%s677] ss:$8 sm:$0xf]
        %v1347 = vlaneseq
        %v1348 = vshrl.u32 %v1347, 7
        %v1349 = vsub.s32 0, %v1348
        %v1350 = vrot.slane %v1345, %v1349
        %v1351 = vlaneseq
        %v1352 = vshrl.u32 %v1351, 7
        %v1353 = vsub.s32 1, %v1352
        %v1354 = vrot.slane %v1345, %v1353
        %v1355 = vlaneseq
        %v1356 = vshrl.u32 %v1355, 7
        %v1357 = vsub.s32 2, %v1356
        %v1358 = vrot.slane %v1345, %v1357
        %v1359 = vlaneseq
        %v1360 = vshrl.u32 %v1359, 7
        %v1361 = vsub.s32 3, %v1360
        %v1362 = vrot.slane %v1345, %v1361
        %v1367 = vmul.f32 %v1341, %v1350
        %v1368 = vmul.f32 %v1339, %v1354
        %v1369 = vmul.f32 %v1337, %v1358
        %v1370 = vmul.f32 %v1343, %v1362
        %v1371 = vmul.f32 %v1342, %v1350
        %v1372 = vmul.f32 %v1340, %v1354
        %v1373 = vmul.f32 %v1338, %v1358
        %v1374 = vmul.f32 %v1344, %v1362
        %v1375 = vpack.c.bf16 %v1371, %v1367
        %v1376 = vpack.c.bf16 %v1372, %v1368
        %v1377 = vpack.c.bf16 %v1373, %v1369
        %v1378 = vpack.c.bf16 %v1374, %v1370
        %1379 = vst [vmem:[#allocation2 + $0xa0] sm:$0xff] %v1375
        %1380 = vst [vmem:[#allocation2 + $0xa8] sm:$0xff] %v1376
        %1381 = vst [vmem:[#allocation2 + $0xb0] sm:$0xff] %v1377
        %1382 = vst [vmem:[#allocation2 + $0xb8] sm:$0xff] %v1378
        %1383 = vrot.lane.b32.xlu0 %v1057, 113
        %v1384 = vpop.permute.xlu0 %1383
        %1385 = vrot.lane.b32.xlu0 %v1061, 113
        %v1386 = vpop.permute.xlu0 %1385
        %1387 = vrot.lane.b32.xlu0 %v1058, 113
        %v1388 = vpop.permute.xlu0 %1387
        %1389 = vrot.lane.b32.xlu0 %v1062, 113
        %v1390 = vpop.permute.xlu0 %1389
        %1391 = vrot.lane.b32.xlu0 %v1059, 113
        %v1392 = vpop.permute.xlu0 %1391
        %1393 = vrot.lane.b32.xlu0 %v1063, 113
        %v1394 = vpop.permute.xlu0 %1393
        %1395 = vrot.lane.b32.xlu0 %v1060, 113
        %v1396 = vpop.permute.xlu0 %1395
        %1397 = vrot.lane.b32.xlu0 %v1064, 113
        %v1398 = vpop.permute.xlu0 %1397
        %v1399 = vsel %vm732, %v1392, %v1396
        %v1400 = vsel %vm732, %v1394, %v1398
        %v1401 = vsel %vm732, %v1388, %v1392
        %v1402 = vsel %vm732, %v1390, %v1394
        %v1403 = vsel %vm732, %v1384, %v1388
        %v1404 = vsel %vm732, %v1386, %v1390
        %v1405 = vsel %vm732, %v1396, %v1384
        %v1406 = vsel %vm732, %v1398, %v1386
        %v1407 = vld [vmem:[%s741] ss:$8 sm:$0xf]
        %v1409 = vlaneseq
        %v1410 = vshrl.u32 %v1409, 7
        %v1411 = vsub.s32 0, %v1410
        %v1412 = vrot.slane %v1407, %v1411
        %v1413 = vlaneseq
        %v1414 = vshrl.u32 %v1413, 7
        %v1415 = vsub.s32 1, %v1414
        %v1416 = vrot.slane %v1407, %v1415
        %v1417 = vlaneseq
        %v1418 = vshrl.u32 %v1417, 7
        %v1419 = vsub.s32 2, %v1418
        %v1420 = vrot.slane %v1407, %v1419
        %v1421 = vlaneseq
        %v1422 = vshrl.u32 %v1421, 7
        %v1423 = vsub.s32 3, %v1422
        %v1424 = vrot.slane %v1407, %v1423
        %v1429 = vmul.f32 %v1403, %v1412
        %v1430 = vmul.f32 %v1401, %v1416
        %v1431 = vmul.f32 %v1399, %v1420
        %v1432 = vmul.f32 %v1405, %v1424
        %v1433 = vmul.f32 %v1404, %v1412
        %v1434 = vmul.f32 %v1402, %v1416
        %v1435 = vmul.f32 %v1400, %v1420
        %v1436 = vmul.f32 %v1406, %v1424
        %v1437 = vpack.c.bf16 %v1433, %v1429
        %v1438 = vpack.c.bf16 %v1434, %v1430
        %v1439 = vpack.c.bf16 %v1435, %v1431
        %v1440 = vpack.c.bf16 %v1436, %v1432
        %1441 = vst [vmem:[#allocation2 + $0xc0] sm:$0xff] %v1437
        %1442 = vst [vmem:[#allocation2 + $0xc8] sm:$0xff] %v1438
        %1443 = vst [vmem:[#allocation2 + $0xd0] sm:$0xff] %v1439
        %1444 = vst [vmem:[#allocation2 + $0xd8] sm:$0xff] %v1440
        %1445 = vrot.lane.b32.xlu0 %v1057, 112
        %v1446 = vpop.permute.xlu0 %1445
        %1447 = vrot.lane.b32.xlu0 %v1061, 112
        %v1448 = vpop.permute.xlu0 %1447
        %1449 = vrot.lane.b32.xlu0 %v1058, 112
        %v1450 = vpop.permute.xlu0 %1449
        %1451 = vrot.lane.b32.xlu0 %v1062, 112
        %v1452 = vpop.permute.xlu0 %1451
        %1453 = vrot.lane.b32.xlu0 %v1059, 112
        %v1454 = vpop.permute.xlu0 %1453
        %1455 = vrot.lane.b32.xlu0 %v1063, 112
        %v1456 = vpop.permute.xlu0 %1455
        %1457 = vrot.lane.b32.xlu0 %v1060, 112
        %v1458 = vpop.permute.xlu0 %1457
        %1459 = vrot.lane.b32.xlu0 %v1064, 112
        %v1460 = vpop.permute.xlu0 %1459
        %v1461 = vsel %vm796, %v1454, %v1458
        %v1462 = vsel %vm796, %v1456, %v1460
        %v1463 = vsel %vm796, %v1450, %v1454
        %v1464 = vsel %vm796, %v1452, %v1456
        %v1465 = vsel %vm796, %v1446, %v1450
        %v1466 = vsel %vm796, %v1448, %v1452
        %v1467 = vsel %vm796, %v1458, %v1446
        %v1468 = vsel %vm796, %v1460, %v1448
        %v1469 = vld [vmem:[%s805] ss:$8 sm:$0xf]
        %v1471 = vlaneseq
        %v1472 = vshrl.u32 %v1471, 7
        %v1473 = vsub.s32 0, %v1472
        %v1474 = vrot.slane %v1469, %v1473
        %v1475 = vlaneseq
        %v1476 = vshrl.u32 %v1475, 7
        %v1477 = vsub.s32 1, %v1476
        %v1478 = vrot.slane %v1469, %v1477
        %v1479 = vlaneseq
        %v1480 = vshrl.u32 %v1479, 7
        %v1481 = vsub.s32 2, %v1480
        %v1482 = vrot.slane %v1469, %v1481
        %v1483 = vlaneseq
        %v1484 = vshrl.u32 %v1483, 7
        %v1485 = vsub.s32 3, %v1484
        %v1486 = vrot.slane %v1469, %v1485
        %v1491 = vmul.f32 %v1465, %v1474
        %v1492 = vmul.f32 %v1463, %v1478
        %v1493 = vmul.f32 %v1461, %v1482
        %v1494 = vmul.f32 %v1467, %v1486
        %v1495 = vmul.f32 %v1466, %v1474
        %v1496 = vmul.f32 %v1464, %v1478
        %v1497 = vmul.f32 %v1462, %v1482
        %v1498 = vmul.f32 %v1468, %v1486
        %v1499 = vpack.c.bf16 %v1495, %v1491
        %v1500 = vpack.c.bf16 %v1496, %v1492
        %v1501 = vpack.c.bf16 %v1497, %v1493
        %v1502 = vpack.c.bf16 %v1498, %v1494
        %1503 = vst [vmem:[#allocation2 + $0xe0] sm:$0xff] %v1499
        %1504 = vst [vmem:[#allocation2 + $0xe8] sm:$0xff] %v1500
        %1505 = vst [vmem:[#allocation2 + $0xf0] sm:$0xff] %v1501
        %1506 = vst [vmem:[#allocation2 + $0xf8] sm:$0xff] %v1502
        %1507 = vrot.lane.b32.xlu0 %v1057, 111
        %v1508 = vpop.permute.xlu0 %1507
        %1509 = vrot.lane.b32.xlu0 %v1061, 111
        %v1510 = vpop.permute.xlu0 %1509
        %1511 = vrot.lane.b32.xlu0 %v1058, 111
        %v1512 = vpop.permute.xlu0 %1511
        %1513 = vrot.lane.b32.xlu0 %v1062, 111
        %v1514 = vpop.permute.xlu0 %1513
        %1515 = vrot.lane.b32.xlu0 %v1059, 111
        %v1516 = vpop.permute.xlu0 %1515
        %1517 = vrot.lane.b32.xlu0 %v1063, 111
        %v1518 = vpop.permute.xlu0 %1517
        %1519 = vrot.lane.b32.xlu0 %v1060, 111
        %v1520 = vpop.permute.xlu0 %1519
        %1521 = vrot.lane.b32.xlu0 %v1064, 111
        %v1522 = vpop.permute.xlu0 %1521
        %v1523 = vsel %vm860, %v1516, %v1520
        %v1524 = vsel %vm860, %v1518, %v1522
        %v1525 = vsel %vm860, %v1512, %v1516
        %v1526 = vsel %vm860, %v1514, %v1518
        %v1527 = vsel %vm860, %v1508, %v1512
        %v1528 = vsel %vm860, %v1510, %v1514
        %v1529 = vsel %vm860, %v1520, %v1508
        %v1530 = vsel %vm860, %v1522, %v1510
        %v1531 = vld [vmem:[%s869] ss:$8 sm:$0xf]
        %v1533 = vlaneseq
        %v1534 = vshrl.u32 %v1533, 7
        %v1535 = vsub.s32 0, %v1534
        %v1536 = vrot.slane %v1531, %v1535
        %v1537 = vlaneseq
        %v1538 = vshrl.u32 %v1537, 7
        %v1539 = vsub.s32 1, %v1538
        %v1540 = vrot.slane %v1531, %v1539
        %v1541 = vlaneseq
        %v1542 = vshrl.u32 %v1541, 7
        %v1543 = vsub.s32 2, %v1542
        %v1544 = vrot.slane %v1531, %v1543
        %v1545 = vlaneseq
        %v1546 = vshrl.u32 %v1545, 7
        %v1547 = vsub.s32 3, %v1546
        %v1548 = vrot.slane %v1531, %v1547
        %v1553 = vmul.f32 %v1527, %v1536
        %v1554 = vmul.f32 %v1525, %v1540
        %v1555 = vmul.f32 %v1523, %v1544
        %v1556 = vmul.f32 %v1529, %v1548
        %v1557 = vmul.f32 %v1528, %v1536
        %v1558 = vmul.f32 %v1526, %v1540
        %v1559 = vmul.f32 %v1524, %v1544
        %v1560 = vmul.f32 %v1530, %v1548
        %v1561 = vpack.c.bf16 %v1557, %v1553
        %v1562 = vpack.c.bf16 %v1558, %v1554
        %v1563 = vpack.c.bf16 %v1559, %v1555
        %v1564 = vpack.c.bf16 %v1560, %v1556
        %1565 = vst [vmem:[#allocation2 + $0x100] sm:$0xff] %v1561
        %1566 = vst [vmem:[#allocation2 + $0x108] sm:$0xff] %v1562
        %1567 = vst [vmem:[#allocation2 + $0x110] sm:$0xff] %v1563
        %1568 = vst [vmem:[#allocation2 + $0x118] sm:$0xff] %v1564
        %v1569 = vld [vmem:[%s4] sm:$0xff]
        %v1570 = vld [vmem:[%s4 + $0x8] sm:$0xff]
        %v1571 = vld [vmem:[#allocation2] sm:$0xff]
        %v1572 = vld [vmem:[#allocation2 + $0x8] sm:$0xff]
        %v1573 = vld [vmem:[#allocation2 + $0x10] sm:$0xff]
        %v1574 = vld [vmem:[#allocation2 + $0x18] sm:$0xff]
        %v1575 = vld [vmem:[#allocation2 + $0x20] sm:$0xff]
        %v1576 = vld [vmem:[#allocation2 + $0x28] sm:$0xff]
        %v1577 = vld [vmem:[#allocation2 + $0x30] sm:$0xff]
        %v1578 = vld [vmem:[#allocation2 + $0x38] sm:$0xff]
        %v1579 = vld [vmem:[#allocation2 + $0x40] sm:$0xff]
        %v1580 = vld [vmem:[#allocation2 + $0x48] sm:$0xff]
        %v1581 = vld [vmem:[#allocation2 + $0x50] sm:$0xff]
        %v1582 = vld [vmem:[#allocation2 + $0x58] sm:$0xff]
        %v1583 = vld [vmem:[#allocation2 + $0x60] sm:$0xff]
        %v1584 = vld [vmem:[#allocation2 + $0x68] sm:$0xff]
        %v1585 = vld [vmem:[#allocation2 + $0x70] sm:$0xff]
        %v1586 = vld [vmem:[#allocation2 + $0x78] sm:$0xff]
        %v1587 = vld [vmem:[#allocation2 + $0x80] sm:$0xff]
        %v1588 = vld [vmem:[#allocation2 + $0x88] sm:$0xff]
        %v1589 = vld [vmem:[#allocation2 + $0x90] sm:$0xff]
        %v1590 = vld [vmem:[#allocation2 + $0x98] sm:$0xff]
        %v1591 = vld [vmem:[#allocation2 + $0xa0] sm:$0xff]
        %v1592 = vld [vmem:[#allocation2 + $0xa8] sm:$0xff]
        %v1593 = vld [vmem:[#allocation2 + $0xb0] sm:$0xff]
        %v1594 = vld [vmem:[#allocation2 + $0xb8] sm:$0xff]
        %v1595 = vld [vmem:[#allocation2 + $0xc0] sm:$0xff]
        %v1596 = vld [vmem:[#allocation2 + $0xc8] sm:$0xff]
        %v1597 = vld [vmem:[#allocation2 + $0xd0] sm:$0xff]
        %v1598 = vld [vmem:[#allocation2 + $0xd8] sm:$0xff]
        %v1599 = vld [vmem:[#allocation2 + $0xe0] sm:$0xff]
        %v1600 = vld [vmem:[#allocation2 + $0xe8] sm:$0xff]
        %v1601 = vld [vmem:[#allocation2 + $0xf0] sm:$0xff]
        %v1602 = vld [vmem:[#allocation2 + $0xf8] sm:$0xff]
        %v1603 = vld [vmem:[#allocation2 + $0x100] sm:$0xff]
        %v1604 = vld [vmem:[#allocation2 + $0x108] sm:$0xff]
        %v1605 = vld [vmem:[#allocation2 + $0x110] sm:$0xff]
        %v1606 = vld [vmem:[#allocation2 + $0x118] sm:$0xff]
        %v1607 = vld [vmem:[%s5] sm:$0xff]
        %v1608 = vld [vmem:[%s5 + $0x8] sm:$0xff]
        %1610 = vset.pattern.permute.xlu0 0
        %1611 = vperm.xlu0 %1610, %v1607
        %v1612 = vpop.permute.xlu0 %1611
        %1615 = vset.pattern.permute.xlu0 0
        %1616 = vperm.xlu0 %1615, %v1608
        %v1617 = vpop.permute.xlu0 %1616
        %v1621 = vunpack.c.l.b16 %v1569
        %v1622 = vunpack.c.h.b16 %v1569
        %v1623 = vunpack.c.l.b16 %v1570
        %v1624 = vunpack.c.h.b16 %v1570
        %v1625 = vpack.c.b16 %v1623, %v1621
        %v1626 = vpack.c.b16 %v1624, %v1622
        %v1629 = vsel %vm967, %v1626, 0
        %1631 = vmatprep.subr.bf16.mxu0 %v1572
        %1632 = vmatpush1.bf16.msra.mxu0 %v1571
        %1633 = vmatprep.subr.bf16.mxu0 %v1576
        %1634 = vmatpush1.bf16.msra.mxu0 %v1575
        %1635 = vmatprep.subr.bf16.mxu0 %v1580
        %1636 = vmatpush1.bf16.msra.mxu0 %v1579
        %1637 = vmatprep.subr.bf16.mxu0 %v1584
        %1638 = vmatpush1.bf16.msra.mxu0 %v1583
        %1639 = vmatprep.subr.bf16.mxu0 %v1588
        %1640 = vmatpush1.bf16.msra.mxu0 %v1587
        %1641 = vmatprep.subr.bf16.mxu0 %v1592
        %1642 = vmatpush1.bf16.msra.mxu0 %v1591
        %1643 = vmatprep.subr.bf16.mxu0 %v1596
        %1644 = vmatpush1.bf16.msra.mxu0 %v1595
        %1645 = vmatprep.subr.bf16.mxu0 %v1600
        %1646 = vmatpush1.bf16.msra.mxu0 %v1599
        %1647 = vmatprep.subr.bf16.mxu0 %v1604
        %1648 = vmatpush1.bf16.msra.mxu0 %v1603
        %1649 = vmatprep.subr.bf16.mxu0 0
        %1650 = vmatpush1.bf16.msra.mxu0 0
        %1651 = vmatprep.subr.bf16.mxu0 0
        %1652 = vmatpush1.bf16.msra.mxu0 0
        %1653 = vmatprep.subr.bf16.mxu0 0
        %1654 = vmatpush1.bf16.msra.mxu0 0
        %1655 = vmatprep.subr.bf16.mxu0 0
        %1656 = vmatpush1.bf16.msra.mxu0 0
        %1657 = vmatprep.subr.bf16.mxu0 0
        %1658 = vmatpush1.bf16.msra.mxu0 0
        %1659 = vmatprep.subr.bf16.mxu0 0
        %1660 = vmatpush1.bf16.msra.mxu0 0
        %1661 = vmatprep.subr.bf16.mxu0 0
        %1662 = vmatpush1.bf16.msra.mxu0 0
        %1663 = vmatprep.mubr.bf16.mxu0 %v1629
        %1664 = vmatmul.mubr.bf16.gmra.mrb[0].mxu0 %v1625
        %v1665 = vpop.f32.mrb[0].mxu0
        %v1666 = vadd.f32 %v1612, %v1665
        %v1667 = vpop.f32.mrb[0].mxu0
        %v1668 = vadd.f32 %v1612, %v1667
        %v1669 = vpop.f32.mrb[0].mxu0
        %v1670 = vadd.f32 %v1617, %v1669
        %v1671 = vpop.f32.mrb[0].mxu0
        %v1672 = vadd.f32 %v1617, %v1671
        %1673 = vdwg.mxu0
        %1674 = vmatprep.subr.bf16.mxu0 %v1574
        %1675 = vmatpush1.bf16.msra.mxu0 %v1573
        %1676 = vmatprep.subr.bf16.mxu0 %v1578
        %1677 = vmatpush1.bf16.msra.mxu0 %v1577
        %1678 = vmatprep.subr.bf16.mxu0 %v1582
        %1679 = vmatpush1.bf16.msra.mxu0 %v1581
        %1680 = vmatprep.subr.bf16.mxu0 %v1586
        %1681 = vmatpush1.bf16.msra.mxu0 %v1585
        %1682 = vmatprep.subr.bf16.mxu0 %v1590
        %1683 = vmatpush1.bf16.msra.mxu0 %v1589
        %1684 = vmatprep.subr.bf16.mxu0 %v1594
        %1685 = vmatpush1.bf16.msra.mxu0 %v1593
        %1686 = vmatprep.subr.bf16.mxu0 %v1598
        %1687 = vmatpush1.bf16.msra.mxu0 %v1597
        %1688 = vmatprep.subr.bf16.mxu0 %v1602
        %1689 = vmatpush1.bf16.msra.mxu0 %v1601
        %1690 = vmatprep.subr.bf16.mxu0 %v1606
        %1691 = vmatpush1.bf16.msra.mxu0 %v1605
        %1692 = vmatprep.subr.bf16.mxu0 0
        %1693 = vmatpush1.bf16.msra.mxu0 0
        %1694 = vmatprep.subr.bf16.mxu0 0
        %1695 = vmatpush1.bf16.msra.mxu0 0
        %1696 = vmatprep.subr.bf16.mxu0 0
        %1697 = vmatpush1.bf16.msra.mxu0 0
        %1698 = vmatprep.subr.bf16.mxu0 0
        %1699 = vmatpush1.bf16.msra.mxu0 0
        %1700 = vmatprep.subr.bf16.mxu0 0
        %1701 = vmatpush1.bf16.msra.mxu0 0
        %1702 = vmatprep.subr.bf16.mxu0 0
        %1703 = vmatpush1.bf16.msra.mxu0 0
        %1704 = vmatprep.subr.bf16.mxu0 0
        %1705 = vmatpush1.bf16.msra.mxu0 0
        %1706 = vmatprep.mubr.bf16.mxu0 %v1629
        %1707 = vmatmul.mubr.bf16.gmra.mrb[0].mxu0 %v1625
        %v1708 = vpop.f32.mrb[0].mxu0
        %v1709 = vadd.f32 %v1612, %v1708
        %v1710 = vpop.f32.mrb[0].mxu0
        %v1711 = vadd.f32 %v1612, %v1710
        %v1712 = vpop.f32.mrb[0].mxu0
        %v1713 = vadd.f32 %v1617, %v1712
        %v1714 = vpop.f32.mrb[0].mxu0
        %v1715 = vadd.f32 %v1617, %v1714
        %1716 = vdwg.mxu0
        %v1717 = vld [vmem:[%s6] sm:$0xff]
        %v1718 = vld [vmem:[%s6 + $0x8] sm:$0xff]
        %v1719 = vld [vmem:[%s7] sm:$0x1]
        %v1720 = vld [vmem:[%s8] sm:$0xff]
        %v1721 = vld [vmem:[%s8 + $0x8] sm:$0xff]
        %v1722 = vld [vmem:[%s9] sm:$0xff]
        %v1723 = vld [vmem:[%s9 + $0x8] sm:$0xff]
        %v1724 = vadd.f32 %v1666, %v1668
        %1725 = vadd.xlane.f32.xlu0 %v1724
        %v1726 = vpop.xlane.xlu0 %1725
        %v1727 = vadd.f32 %v1670, %v1672
        %1728 = vadd.xlane.f32.xlu0 %v1727
        %v1729 = vpop.xlane.xlu0 %1728
        %v1730 = vrcp.pop 256.0
        %v1731 = vmul.f32 %v1726, %v1730
        %v1732 = vmul.f32 %v1729, %v1730
        %v1733 = vmul.f32 %v1717, %v1731
        %v1734 = vmul.f32 %v1718, %v1732
        %vm1735 = vcmask 64512
        %v1736 = vsel %vm1735, %v1733, 0.0
        %v1737 = vsel %vm1735, %v1734, 0.0
        %v1738 = vadd.f32 %v1736, %v1737
        %v1739 = vrot.slane %v1738, 4
        %v1740 = vadd.f32 %v1738, %v1739
        %v1741 = vrot.slane %v1740, 2
        %v1742 = vadd.f32 %v1740, %v1741
        %v1743 = vrot.slane %v1742, 1
        %v1744 = vadd.f32 %v1742, %v1743
        %v1745 = vadd.f32 %v1744, %v1719
        %v1746 = vxor.u32 %v1745, 2147483648
        %v1747 = vmul.f32 %v1746, 1.442695
        %v1748 = vpow.pop %v1747
        %v1749 = vadd.f32 %v1748, 1.0
        %v1750 = vrcp.pop %v1749
        %v1751 = vmul.f32 1.0, %v1750
        %v1752 = vlaneseq
        %v1753 = vshrl.u32 %v1752, 7
        %v1754 = vsub.s32 0, %v1753
        %v1755 = vrot.slane %v1751, %v1754
        %v1756 = vmul.f32 %v1720, %v1755
        %v1757 = vmul.f32 %v1721, %v1755
        %v1758 = vsel %vm1735, %v1756, 0.0
        %1759 = vadd.xlane.f32.xlu0 %v1758
        %v1760 = vpop.xlane.xlu0 %1759
        %v1761 = vsel %vm1735, %v1757, 0.0
        %1762 = vadd.xlane.f32.xlu0 %v1761
        %v1763 = vpop.xlane.xlu0 %1762
        %v1764 = vadd.f32 %v1760, %v1722
        %v1765 = vadd.f32 %v1763, %v1723
        %v1766 = vmax.f32 %v1764, 0.0
        %v1767 = vmax.f32 %v1765, 0.0
        %1769 = vset.pattern.permute.xlu0 0
        %1770 = vperm.xlu0 %1769, %v1766
        %v1771 = vpop.permute.xlu0 %1770
        %1774 = vset.pattern.permute.xlu0 0
        %1775 = vperm.xlu0 %1774, %v1767
        %v1776 = vpop.permute.xlu0 %1775
        %v1778 = vmul.f32 %v1666, %v1771
        %v1779 = vmul.f32 %v1668, %v1771
        %v1780 = vmul.f32 %v1670, %v1776
        %v1781 = vmul.f32 %v1672, %v1776
        %1782 = vst [vmem:[%s377] sm:$0xff] %v1778
        %1783 = vst [vmem:[%s377 + $0x8] sm:$0xff] %v1779
        %1784 = vst [vmem:[%s377 + $0x20] sm:$0xff] %v1780
        %1785 = vst [vmem:[%s377 + $0x28] sm:$0xff] %v1781
        %v1786 = vadd.f32 %v1709, %v1711
        %1787 = vadd.xlane.f32.xlu0 %v1786
        %v1788 = vpop.xlane.xlu0 %1787
        %v1789 = vadd.f32 %v1713, %v1715
        %1790 = vadd.xlane.f32.xlu0 %v1789
        %v1791 = vpop.xlane.xlu0 %1790
        %v1792 = vmul.f32 %v1788, %v1730
        %v1793 = vmul.f32 %v1791, %v1730
        %v1794 = vmul.f32 %v1717, %v1792
        %v1795 = vmul.f32 %v1718, %v1793
        %v1796 = vsel %vm1735, %v1794, 0.0
        %v1797 = vsel %vm1735, %v1795, 0.0
        %v1798 = vadd.f32 %v1796, %v1797
        %v1799 = vrot.slane %v1798, 4
        %v1800 = vadd.f32 %v1798, %v1799
        %v1801 = vrot.slane %v1800, 2
        %v1802 = vadd.f32 %v1800, %v1801
        %v1803 = vrot.slane %v1802, 1
        %v1804 = vadd.f32 %v1802, %v1803
        %v1805 = vadd.f32 %v1804, %v1719
        %v1806 = vxor.u32 %v1805, 2147483648
        %v1807 = vmul.f32 %v1806, 1.442695
        %v1808 = vpow.pop %v1807
        %v1809 = vadd.f32 %v1808, 1.0
        %v1810 = vrcp.pop %v1809
        %v1811 = vmul.f32 1.0, %v1810
        %v1812 = vlaneseq
        %v1813 = vshrl.u32 %v1812, 7
        %v1814 = vsub.s32 0, %v1813
        %v1815 = vrot.slane %v1811, %v1814
        %v1816 = vmul.f32 %v1720, %v1815
        %v1817 = vmul.f32 %v1721, %v1815
        %v1818 = vsel %vm1735, %v1816, 0.0
        %1819 = vadd.xlane.f32.xlu0 %v1818
        %v1820 = vpop.xlane.xlu0 %1819
        %v1821 = vsel %vm1735, %v1817, 0.0
        %1822 = vadd.xlane.f32.xlu0 %v1821
        %v1823 = vpop.xlane.xlu0 %1822
        %v1824 = vadd.f32 %v1820, %v1722
        %v1825 = vadd.f32 %v1823, %v1723
        %v1826 = vmax.f32 %v1824, 0.0
        %v1827 = vmax.f32 %v1825, 0.0
        %1829 = vset.pattern.permute.xlu0 0
        %1830 = vperm.xlu0 %1829, %v1826
        %v1831 = vpop.permute.xlu0 %1830
        %1834 = vset.pattern.permute.xlu0 0
        %1835 = vperm.xlu0 %1834, %v1827
        %v1836 = vpop.permute.xlu0 %1835
        %v1838 = vmul.f32 %v1709, %v1831
        %v1839 = vmul.f32 %v1711, %v1831
        %v1840 = vmul.f32 %v1713, %v1836
        %v1841 = vmul.f32 %v1715, %v1836
        %1842 = vst [vmem:[%s377 + $0x10] sm:$0xff] %v1838
        %1843 = vst [vmem:[%s377 + $0x18] sm:$0xff] %v1839
        %1844 = vst [vmem:[%s377 + $0x30] sm:$0xff] %v1840
        %1845 = vst [vmem:[%s377 + $0x38] sm:$0xff] %v1841
        %s1846 = sand.u32 %s250, 1
        %s1847 = scalar_lea.sflag [#allocation5], %s1846
        %s1848 = sand.u32 %s250, 1
        %s1849 = smul.addr %s1848, 64
        %s1850 = scalar_lea.vmem [#allocation6], %s1849
        // Predicated region
        $region65: #{tpu_custom_call.1} parent=59 // pred_check
          %p1851 = pneg %p260
        $region66: #{tpu_custom_call.1} parent=59 // pred_check_branch
          %1853 = sbr.rel (%p1851) target = $region68
        $region67: #{tpu_custom_call.1} parent=59 // pred_region
          %s1855 = ssub.s32 1024, 1024
          %1856 = vsyncadd %s1847, %s1855
          %s1857 = smul.addr %s27, 8
          %s1858 = smul.addr %s1857, 128
          %s1859 = scalar_lea.hbm %s10, %s1858
          %s1860 = sshll.u32 %s1850, 4
          %s1861 = int_to_ptr.vmem [resolvable:$true] %s1860
          %1866 = dma.vmem_to_hbm [thread:$0]  %s1861, 1024, %s1859, %s1847, 512, 512, 32
        $region68: #{tpu_custom_call.1} parent=59 // pred_fallthru
          _
      $region60: #{tpu_custom_call.1} parent=5 // pred_fallthru
        _
      %p1867 = scmp.le.s32.totalorder 2, %s22
      // Predicated region
      $region69: #{tpu_custom_call.1} parent=5 // pred_check
        %p1868 = pneg %p1867
      $region70: #{tpu_custom_call.1} parent=5 // pred_check_branch
        %1870 = sbr.rel (%p1868) target = $region72
      $region71: #{tpu_custom_call.1} parent=5 // pred_region
        %s1871 = ssub.s32 %s22, 2
        // Predicated region
        $region73: #{tpu_custom_call.1} parent=71 // pred_check
          %p1872 = pneg %p266
        $region74: #{tpu_custom_call.1} parent=71 // pred_check_branch
          %1874 = sbr.rel (%p1872) target = $region76
        $region75: #{tpu_custom_call.1} parent=71 // pred_region
          %s1875 = sand.u32 %s251, 1
          %s1876 = scalar_lea.sflag [#allocation5], %s1875
          %s1877 = sand.u32 %s251, 1
          %s1878 = smul.addr %s1877, 64
          %s1879 = scalar_lea.vmem [#allocation6], %s1878
          %1880 = dma.done %s1876, 1024
        $region76: #{tpu_custom_call.1} parent=71 // pred_fallthru
          _
      $region72: #{tpu_custom_call.1} parent=5 // pred_fallthru
        _
    $region6: #{tpu_custom_call.1} parent=1 // loop_footer
      %s26 = sadd.s32 1, %s22
    $region7: #{tpu_custom_call.1} parent=1 // loop_footer_branch
      %21 = sbr.rel target = $region3
    $region8: #{tpu_custom_call.1} parent=1 // loop_exit
      _
    %1881 = vsyncpa [#allocation4], 1
    %s1882 = scalar_lea.sflag [#allocation4], 1
    %1883 = vsyncpa %s1882, 1
    %1884 = vsyncpa [#allocation5], 1
    %s1885 = scalar_lea.sflag [#allocation5], 1
    %1886 = vsyncpa %s1885, 1

</llo_original>
